<compile_context>
chip_gen: v6e
topology: v6e:2x2x1
jax: 0.10.0
libtpu: 0.0.40
codegen_flags: <defaults>
</compile_context>

<pallas_src>
import functools

import jax
import jax.numpy as jnp
from jax.experimental import pallas as pl
from jax.experimental.pallas import tpu as pltpu

LANE = 128
SUBLANE = 8


def _round_up(n, m):
    return ((n + m - 1) // m) * m


def _pad2(a, rows, cols):
    return jnp.pad(a, ((0, rows - a.shape[0]), (0, cols - a.shape[1])))


def _default_num_blocks():
    """2 grid steps on dual-TensorCore chips (v7x / v4 / v5p), else 1."""
    try:
        kind = jax.devices()[0].device_kind.lower()
    except Exception:
        return 1
    return 2 if any(t in kind for t in ("v7", "7x", "v4", "v5p")) else 1


def mlp_kernel(x_ref, w1_ref, w2_ref, b2_ref, w3_ref, b3_ref, o_ref):
    # Fused 3-layer MLP: matmuls on the MXU (bf16 in, f32 accumulate),
    # bias/ReLU on the VPU in f32, exp + approx reciprocal on the EUP.
    x = x_ref[...]                                                     # (TB, K1) bf16
    # Layer 1: b1 is folded into w1 via the constant-1 input column -> no bias add needed.
    h1 = jnp.dot(x, w1_ref[...], preferred_element_type=jnp.float32)
    h1 = jnp.maximum(h1, 0.0).astype(jnp.bfloat16)                     # (TB, H)
    h2 = jnp.dot(h1, w2_ref[...], preferred_element_type=jnp.float32) + b2_ref[...]
    h2 = jnp.maximum(h2, 0.0).astype(jnp.bfloat16)                     # (TB, H)
    logits = jnp.dot(h2, w3_ref[...], preferred_element_type=jnp.float32) + b3_ref[...]
    # sigmoid(x) = 1 / (1 + exp(-x)); reciprocal on the EUP slot (essentially free here).
    probs = pl.reciprocal(1.0 + jnp.exp(-logits), approx=True)         # (TB, O) f32
    o_ref[...] = probs.astype(o_ref.dtype)                             # bf16 lane-dense store


def prepare_params(params):
    """Pad / cast parameters ONCE (hoisted out of the per-call path).

    Folds b1 into w1 as an extra row (used together with a constant-1 input column).
    Returns bf16 weights (MXU operands) and f32 biases for layers 2/3.
    """
    w1, b1 = params["w1"], params["b1"]
    w2, b2 = params["w2"], params["b2"]
    w3, b3 = params["w3"], params["b3"]
    in_dim, hidden = w1.shape
    out_dim = w3.shape[1]

    K1 = _round_up(in_dim + 1, SUBLANE)   # +1 for the bias-trick column; 7 -> 8
    H = _round_up(hidden, LANE)           # 64 -> 128
    O = _round_up(out_dim, LANE)          # 12 -> 128 (lane-dense output store)

    w1b = jnp.concatenate([w1, b1[None, :]], axis=0)                   # (in_dim+1, hidden)
    return {
        "w1p": _pad2(w1b, K1, H).astype(jnp.bfloat16),
        "w2p": _pad2(w2, H, H).astype(jnp.bfloat16),
        "b2p": _pad2(b2.reshape(1, -1).astype(jnp.float32), 1, H),
        "w3p": _pad2(w3, H, O).astype(jnp.bfloat16),
        "b3p": _pad2(b3.reshape(1, -1).astype(jnp.float32), 1, O),
    }


@functools.partial(jax.jit, static_argnames=("out_dim", "num_blocks"))
def multilabel_net_forward(x, pp, *, out_dim, num_blocks=1):
    """x: [B, input_dim] float32. pp: prepare_params(params). Returns [B, out_dim] float32."""
    B, in_dim = x.shape
    K1, H = pp["w1p"].shape
    O = pp["w3p"].shape[1]

    # Batch tiling: pad B to a multiple of 16 first (bf16 sublane packing), then split into
    # `num_blocks` tiles (1 per TensorCore). TB is always a multiple of 16, overshoot is tiny.
    B16 = _round_up(B, 16)
    nb = max(1, min(num_blocks, max(1, B16 // 16)))
    TB = _round_up(pl.cdiv(B16, nb), 16)
    grid_steps = pl.cdiv(B16, TB)
    B_pad = grid_steps * TB

    # x: append the constant-1 bias-trick column, zero-pad to (B_pad, K1), cast to bf16.
    xp = jnp.concatenate([x, jnp.ones((B, 1), x.dtype)], axis=1)
    xp = jnp.pad(xp, ((0, B_pad - B), (0, K1 - (in_dim + 1)))).astype(jnp.bfloat16)

    # Advisory cost estimate so XLA overlaps this small call with surrounding HLO.
    flops = 2 * B_pad * (K1 * H + H * H + H * O)
    bytes_accessed = (
        xp.size * 2
        + (pp["w1p"].size + pp["w2p"].size + pp["w3p"].size) * 2
        + (pp["b2p"].size + pp["b3p"].size) * 4
        + B_pad * O * 2
    )
    cost = pl.CostEstimate(flops=flops, transcendentals=B_pad * O,
                           bytes_accessed=bytes_accessed)

    # NOTE: total VMEM (double-buffered x/out tiles + resident weights) is well under 1 MiB,
    # far inside even v7x's 64 MiB budget. If hidden_dim is ever scaled to >= 2048, re-check
    # this and tile the hidden dim with a k-grid axis + accumulator scratch instead.
    out_padded = pl.pallas_call(
        mlp_kernel,
        out_shape=jax.ShapeDtypeStruct((B_pad, O), jnp.bfloat16),
        grid=(grid_steps,),
        in_specs=[
            pl.BlockSpec((TB, K1), lambda i: (i, 0)),   # x tile walks the batch axis
            pl.BlockSpec((K1, H), lambda i: (0, 0)),    # w1 (with folded b1), resident
            pl.BlockSpec((H, H), lambda i: (0, 0)),     # w2
            pl.BlockSpec((1, H), lambda i: (0, 0)),     # b2
            pl.BlockSpec((H, O), lambda i: (0, 0)),     # w3
            pl.BlockSpec((1, O), lambda i: (0, 0)),     # b3
        ],
        out_specs=pl.BlockSpec((TB, O), lambda i: (i, 0)),
        compiler_params=pltpu.CompilerParams(
            dimension_semantics=("parallel",),          # shard batch grid across TCs on v7x
        ),
        cost_estimate=cost,
    )(xp, pp["w1p"], pp["w2p"], pp["b2p"], pp["w3p"], pp["b3p"])

    # Slice away padding (bf16 -> half the re-read bytes), widen to f32 for callers.
    return out_padded[:B, :out_dim].astype(jnp.float32)


def init_params(key, input_dim, hidden_dim, output_dim):
    """Deterministic synthetic init (PyTorch-style uniform fan-in bounds)."""
    ks = jax.random.split(key, 6)

    def lin(kw, kb, fan_in, fan_out):
        bound = 1.0 / jnp.sqrt(fan_in)
        w = jax.random.uniform(kw, (fan_in, fan_out), jnp.float32, -bound, bound)
        b = jax.random.uniform(kb, (fan_out,), jnp.float32, -bound, bound)
        return w, b

    w1, b1 = lin(ks[0], ks[1], input_dim, hidden_dim)
    w2, b2 = lin(ks[2], ks[3], hidden_dim, hidden_dim)
    w3, b3 = lin(ks[4], ks[5], hidden_dim, output_dim)
    return {"w1": w1, "b1": b1, "w2": w2, "b2": b2, "w3": w3, "b3": b3}


def reference_forward(x, params):
    # Plain-JAX reference matching the kernel's bf16-matmul / f32-accumulate numerics.
    bf = jnp.bfloat16
    h1 = jnp.maximum(
        jnp.dot(x.astype(bf), params["w1"].astype(bf),
                preferred_element_type=jnp.float32) + params["b1"][None, :], 0.0)
    h2 = jnp.maximum(
        jnp.dot(h1.astype(bf), params["w2"].astype(bf),
                preferred_element_type=jnp.float32) + params["b2"][None, :], 0.0)
    logits = jnp.dot(h2.astype(bf), params["w3"].astype(bf),
                     preferred_element_type=jnp.float32) + params["b3"][None, :]
    return jax.nn.sigmoid(logits)


if __name__ == "__main__":
    # TODO(synk): CSV loading / MultiLabelBinarizer preprocessing from the original script
    # is host-side data prep with no Pallas equivalent; only the nn.Module forward is kernelized.
    # input_dim = 7 (the 7 feature columns); output_dim = 12 (synthetic label set).
    batch, input_dim, hidden_dim, output_dim = 512, 7, 64, 12

    key = jax.random.PRNGKey(0)
    kx, kp = jax.random.split(key)
    x = jax.random.normal(kx, (batch, input_dim), dtype=jnp.float32)
    params = init_params(kp, input_dim, hidden_dim, output_dim)

    padded_params = prepare_params(params)              # one-time pad/cast (hoisted)
    num_blocks = _default_num_blocks()                   # 1 on v5e/v6e, 2 on dual-TC chips

    out = multilabel_net_forward(x, padded_params, out_dim=output_dim,
                                 num_blocks=num_blocks)
    jax.block_until_ready(out)

    ref = reference_forward(x, params)
    assert out.shape == (batch, output_dim), out.shape
    assert jnp.allclose(out, ref, atol=1e-2, rtol=1e-2), float(jnp.max(jnp.abs(out - ref)))

    print("KERNEL_OK")
</pallas_src>

<mosaic_0001>
module attributes {stable_mosaic.version = 11 : i64} {
  func.func @mlp_kernel(%arg0: i32, %arg1: memref<512x8xbf16, #tpu.memory_space<vmem>>, %arg2: memref<8x128xbf16, #tpu.memory_space<vmem>>, %arg3: memref<128x128xbf16, #tpu.memory_space<vmem>>, %arg4: memref<1x128xf32, #tpu.memory_space<vmem>>, %arg5: memref<128x128xbf16, #tpu.memory_space<vmem>>, %arg6: memref<1x128xf32, #tpu.memory_space<vmem>>, %arg7: memref<512x128xbf16, #tpu.memory_space<vmem>>) attributes {dimension_semantics = [#tpu.dimension_semantics<parallel>], iteration_bounds = array<i64: 1>, scalar_prefetch = 0 : i64, scratch_operands = 0 : i64, tpu.core_type = #tpu.core_type<tc>, window_params = [{transform_indices = @transform_0, window_bounds = array<i64: 512, 8>}, {pipeline_mode = #tpu.pipeline_mode<synchronous>, transform_indices = @transform_1, window_bounds = array<i64: 8, 128>}, {pipeline_mode = #tpu.pipeline_mode<synchronous>, transform_indices = @transform_2, window_bounds = array<i64: 128, 128>}, {pipeline_mode = #tpu.pipeline_mode<synchronous>, transform_indices = @transform_3, window_bounds = array<i64: 1, 128>}, {pipeline_mode = #tpu.pipeline_mode<synchronous>, transform_indices = @transform_4, window_bounds = array<i64: 128, 128>}, {pipeline_mode = #tpu.pipeline_mode<synchronous>, transform_indices = @transform_5, window_bounds = array<i64: 1, 128>}, {transform_indices = @transform_6, window_bounds = array<i64: 512, 128>}]} {
    %c0 = arith.constant 0 : index
    %c0_0 = arith.constant 0 : index
    %0 = vector.load %arg1[%c0, %c0_0] : memref<512x8xbf16, #tpu.memory_space<vmem>>, vector<512x8xbf16>
    %c0_1 = arith.constant 0 : index
    %c0_2 = arith.constant 0 : index
    %1 = vector.load %arg2[%c0_1, %c0_2] : memref<8x128xbf16, #tpu.memory_space<vmem>>, vector<8x128xbf16>
    %cst = arith.constant dense<0.000000e+00> : vector<512x128xf32>
    %2 = tpu.matmul %0, %1, %cst {dimension_numbers = #tpu.dot_dimension_numbers<[1], [0], [0], [1], [0, 0, 1, 1], [], []>} : vector<512x8xbf16>, vector<8x128xbf16>, vector<512x128xf32> -> vector<512x128xf32>
    %cst_3 = arith.constant 0.000000e+00 : f32
    %3 = vector.broadcast %cst_3 : f32 to vector<512x128xf32>
    %4 = arith.maximumf %2, %3 : vector<512x128xf32>
    %5 = arith.truncf %4 : vector<512x128xf32> to vector<512x128xbf16>
    %c0_4 = arith.constant 0 : index
    %c0_5 = arith.constant 0 : index
    %6 = vector.load %arg3[%c0_4, %c0_5] : memref<128x128xbf16, #tpu.memory_space<vmem>>, vector<128x128xbf16>
    %cst_6 = arith.constant dense<0.000000e+00> : vector<512x128xf32>
    %7 = tpu.matmul %5, %6, %cst_6 {dimension_numbers = #tpu.dot_dimension_numbers<[1], [0], [0], [1], [0, 0, 1, 1], [], []>} : vector<512x128xbf16>, vector<128x128xbf16>, vector<512x128xf32> -> vector<512x128xf32>
    %c0_7 = arith.constant 0 : index
    %c0_8 = arith.constant 0 : index
    %8 = vector.load %arg4[%c0_7, %c0_8] : memref<1x128xf32, #tpu.memory_space<vmem>>, vector<1x128xf32>
    %9 = vector.broadcast %8 : vector<1x128xf32> to vector<512x128xf32>
    %10 = arith.addf %7, %9 : vector<512x128xf32>
    %cst_9 = arith.constant 0.000000e+00 : f32
    %11 = vector.broadcast %cst_9 : f32 to vector<512x128xf32>
    %12 = arith.maximumf %10, %11 : vector<512x128xf32>
    %13 = arith.truncf %12 : vector<512x128xf32> to vector<512x128xbf16>
    %c0_10 = arith.constant 0 : index
    %c0_11 = arith.constant 0 : index
    %14 = vector.load %arg5[%c0_10, %c0_11] : memref<128x128xbf16, #tpu.memory_space<vmem>>, vector<128x128xbf16>
    %cst_12 = arith.constant dense<0.000000e+00> : vector<512x128xf32>
    %15 = tpu.matmul %13, %14, %cst_12 {dimension_numbers = #tpu.dot_dimension_numbers<[1], [0], [0], [1], [0, 0, 1, 1], [], []>} : vector<512x128xbf16>, vector<128x128xbf16>, vector<512x128xf32> -> vector<512x128xf32>
    %c0_13 = arith.constant 0 : index
    %c0_14 = arith.constant 0 : index
    %16 = vector.load %arg6[%c0_13, %c0_14] : memref<1x128xf32, #tpu.memory_space<vmem>>, vector<1x128xf32>
    %17 = vector.broadcast %16 : vector<1x128xf32> to vector<512x128xf32>
    %18 = arith.addf %15, %17 : vector<512x128xf32>
    %cst_15 = arith.constant 0.000000e+00 : f32
    %19 = vector.broadcast %cst_15 : f32 to vector<512x128xf32>
    %20 = arith.subf %19, %18 : vector<512x128xf32>
    %21 = math.exp %20 : vector<512x128xf32>
    %cst_16 = arith.constant 1.000000e+00 : f32
    %22 = vector.broadcast %cst_16 : f32 to vector<512x128xf32>
    %23 = arith.addf %22, %21 : vector<512x128xf32>
    %24 = tpu.reciprocal %23 {approx = true} : vector<512x128xf32> -> vector<512x128xf32>
    %25 = arith.truncf %24 : vector<512x128xf32> to vector<512x128xbf16>
    %c0_17 = arith.constant 0 : index
    %c0_18 = arith.constant 0 : index
    %26 = vector.load %arg7[%c0_17, %c0_18] : memref<512x128xbf16, #tpu.memory_space<vmem>>, vector<512x128xbf16>
    tpu.vector_store %arg7[%c0_17, %c0_18], %25 {strides = array<i32>} : memref<512x128xbf16, #tpu.memory_space<vmem>>, vector<512x128xbf16>,
    return
  }
  func.func @transform_0(%arg0: i32) -> (i32, i32) {
    %c0_i32 = arith.constant 0 : i32
    %c0_i32_0 = arith.constant 0 : i32
    return %arg0, %c0_i32 : i32, i32
  }
  func.func @transform_1(%arg0: i32) -> (i32, i32) {
    %c0_i32 = arith.constant 0 : i32
    %c0_i32_0 = arith.constant 0 : i32
    %c0_i32_1 = arith.constant 0 : i32
    return %c0_i32, %c0_i32_0 : i32, i32
  }
  func.func @transform_2(%arg0: i32) -> (i32, i32) {
    %c0_i32 = arith.constant 0 : i32
    %c0_i32_0 = arith.constant 0 : i32
    %c0_i32_1 = arith.constant 0 : i32
    return %c0_i32, %c0_i32_0 : i32, i32
  }
  func.func @transform_3(%arg0: i32) -> (i32, i32) {
    %c0_i32 = arith.constant 0 : i32
    %c0_i32_0 = arith.constant 0 : i32
    %c0_i32_1 = arith.constant 0 : i32
    return %c0_i32, %c0_i32_0 : i32, i32
  }
  func.func @transform_4(%arg0: i32) -> (i32, i32) {
    %c0_i32 = arith.constant 0 : i32
    %c0_i32_0 = arith.constant 0 : i32
    %c0_i32_1 = arith.constant 0 : i32
    return %c0_i32, %c0_i32_0 : i32, i32
  }
  func.func @transform_5(%arg0: i32) -> (i32, i32) {
    %c0_i32 = arith.constant 0 : i32
    %c0_i32_0 = arith.constant 0 : i32
    %c0_i32_1 = arith.constant 0 : i32
    return %c0_i32, %c0_i32_0 : i32, i32
  }
  func.func @transform_6(%arg0: i32) -> (i32, i32) {
    %c0_i32 = arith.constant 0 : i32
    %c0_i32_0 = arith.constant 0 : i32
    return %arg0, %c0_i32 : i32, i32
  }
}

</mosaic_0001>

<llo_original>
// kernel: multilabel_net_forward.1
$region0: #{multilabel_net_forward.1}
  #allocation0 [shape = 'u32[]', space=smem, size = 0x4, offset = 0x4, fixed_abs, tag = 'smem constant byte address 0x4 - core index']
  #allocation1 [shape = 'u32[144,128]{1,0:T(1,128)}', space=vmem, size = 0x12000, scoped, tag = 'internal scratch']
  %s0 = inlined_call_operand.vmem [shape: bf16[512,8], index: 0, kind: input, shape index: {}]
  %s1 = inlined_call_operand.vmem [shape: bf16[8,128], index: 1, kind: input, shape index: {}]
  %s2 = inlined_call_operand.vmem [shape: bf16[128,128], index: 2, kind: input, shape index: {}]
  %s3 = inlined_call_operand.vmem [shape: f32[1,128], index: 3, kind: input, shape index: {}]
  %s4 = inlined_call_operand.vmem [shape: bf16[128,128], index: 4, kind: input, shape index: {}]
  %s5 = inlined_call_operand.vmem [shape: f32[1,128], index: 5, kind: input, shape index: {}]
  %s6 = inlined_call_operand.vmem [shape: bf16[512,128], index: 6, kind: output, shape index: {}]
  %s7 = sld [smem:[#allocation0]]
  $region34: #{multilabel_net_forward.1} parent=0
    _
  %s9 = ssub.s32 1, %s7
  %s10 = scalar_select 0, %s9, %s7
  // Predicated region
  $region2: #{multilabel_net_forward.1} parent=0 // pred_check
    _
  $region3: #{multilabel_net_forward.1} parent=0 // pred_check_branch
    %12 = sbr.rel (0) target = $region5
  $region4: #{multilabel_net_forward.1} parent=0 // pred_region
    _
  $region5: #{multilabel_net_forward.1} parent=0 // pred_fallthru
    _
  // Predicated region
  $region6: #{multilabel_net_forward.1} parent=0 // pred_check
    _
  $region7: #{multilabel_net_forward.1} parent=0 // pred_check_branch
    %14 = sbr.rel (0) target = $region9
  $region8: #{multilabel_net_forward.1} parent=0 // pred_region
    _
  $region9: #{multilabel_net_forward.1} parent=0 // pred_fallthru
    _
  // Predicated region
  $region10: #{multilabel_net_forward.1} parent=0 // pred_check
    _
  $region11: #{multilabel_net_forward.1} parent=0 // pred_check_branch
    %16 = sbr.rel (0) target = $region13
  $region12: #{multilabel_net_forward.1} parent=0 // pred_region
    _
  $region13: #{multilabel_net_forward.1} parent=0 // pred_fallthru
    _
  // Predicated region
  $region14: #{multilabel_net_forward.1} parent=0 // pred_check
    _
  $region15: #{multilabel_net_forward.1} parent=0 // pred_check_branch
    %18 = sbr.rel (0) target = $region17
  $region16: #{multilabel_net_forward.1} parent=0 // pred_region
    _
  $region17: #{multilabel_net_forward.1} parent=0 // pred_fallthru
    _
  // Predicated region
  $region18: #{multilabel_net_forward.1} parent=0 // pred_check
    _
  $region19: #{multilabel_net_forward.1} parent=0 // pred_check_branch
    %20 = sbr.rel (0) target = $region21
  $region20: #{multilabel_net_forward.1} parent=0 // pred_region
    _
  $region21: #{multilabel_net_forward.1} parent=0 // pred_fallthru
    _
  // Predicated region
  $region22: #{multilabel_net_forward.1} parent=0 // pred_check
    _
  $region23: #{multilabel_net_forward.1} parent=0 // pred_check_branch
    %22 = sbr.rel (0) target = $region25
  $region24: #{multilabel_net_forward.1} parent=0 // pred_region
    _
  $region25: #{multilabel_net_forward.1} parent=0 // pred_fallthru
    _
  %v24 = vld [vmem:[%s0] sm:$0xf]
  %v25 = vld [vmem:[%s0 + $0x4] sm:$0xf]
  %v26 = vld [vmem:[%s0 + $0x8] sm:$0xf]
  %v27 = vld [vmem:[%s0 + $0xc] sm:$0xf]
  %v28 = vld [vmem:[%s0 + $0x10] sm:$0xf]
  %v29 = vld [vmem:[%s0 + $0x14] sm:$0xf]
  %v30 = vld [vmem:[%s0 + $0x18] sm:$0xf]
  %v31 = vld [vmem:[%s0 + $0x1c] sm:$0xf]
  %v32 = vld [vmem:[%s0 + $0x20] sm:$0xf]
  %v33 = vld [vmem:[%s0 + $0x24] sm:$0xf]
  %v34 = vld [vmem:[%s0 + $0x28] sm:$0xf]
  %v35 = vld [vmem:[%s0 + $0x2c] sm:$0xf]
  %v36 = vld [vmem:[%s0 + $0x30] sm:$0xf]
  %v37 = vld [vmem:[%s0 + $0x34] sm:$0xf]
  %v38 = vld [vmem:[%s0 + $0x38] sm:$0xf]
  %v39 = vld [vmem:[%s0 + $0x3c] sm:$0xf]
  %v40 = vld [vmem:[%s0 + $0x40] sm:$0xf]
  %v41 = vld [vmem:[%s0 + $0x44] sm:$0xf]
  %v42 = vld [vmem:[%s0 + $0x48] sm:$0xf]
  %v43 = vld [vmem:[%s0 + $0x4c] sm:$0xf]
  %v44 = vld [vmem:[%s0 + $0x50] sm:$0xf]
  %v45 = vld [vmem:[%s0 + $0x54] sm:$0xf]
  %v46 = vld [vmem:[%s0 + $0x58] sm:$0xf]
  %v47 = vld [vmem:[%s0 + $0x5c] sm:$0xf]
  %v48 = vld [vmem:[%s0 + $0x60] sm:$0xf]
  %v49 = vld [vmem:[%s0 + $0x64] sm:$0xf]
  %v50 = vld [vmem:[%s0 + $0x68] sm:$0xf]
  %v51 = vld [vmem:[%s0 + $0x6c] sm:$0xf]
  %v52 = vld [vmem:[%s0 + $0x70] sm:$0xf]
  %v53 = vld [vmem:[%s0 + $0x74] sm:$0xf]
  %v54 = vld [vmem:[%s0 + $0x78] sm:$0xf]
  %v55 = vld [vmem:[%s0 + $0x7c] sm:$0xf]
  %v56 = vld [vmem:[%s0 + $0x80] sm:$0xf]
  %v57 = vld [vmem:[%s0 + $0x84] sm:$0xf]
  %v58 = vld [vmem:[%s0 + $0x88] sm:$0xf]
  %v59 = vld [vmem:[%s0 + $0x8c] sm:$0xf]
  %v60 = vld [vmem:[%s0 + $0x90] sm:$0xf]
  %v61 = vld [vmem:[%s0 + $0x94] sm:$0xf]
  %v62 = vld [vmem:[%s0 + $0x98] sm:$0xf]
  %v63 = vld [vmem:[%s0 + $0x9c] sm:$0xf]
  %v64 = vld [vmem:[%s0 + $0xa0] sm:$0xf]
  %v65 = vld [vmem:[%s0 + $0xa4] sm:$0xf]
  %v66 = vld [vmem:[%s0 + $0xa8] sm:$0xf]
  %v67 = vld [vmem:[%s0 + $0xac] sm:$0xf]
  %v68 = vld [vmem:[%s0 + $0xb0] sm:$0xf]
  %v69 = vld [vmem:[%s0 + $0xb4] sm:$0xf]
  %v70 = vld [vmem:[%s0 + $0xb8] sm:$0xf]
  %v71 = vld [vmem:[%s0 + $0xbc] sm:$0xf]
  %v72 = vld [vmem:[%s0 + $0xc0] sm:$0xf]
  %v73 = vld [vmem:[%s0 + $0xc4] sm:$0xf]
  %v74 = vld [vmem:[%s0 + $0xc8] sm:$0xf]
  %v75 = vld [vmem:[%s0 + $0xcc] sm:$0xf]
  %v76 = vld [vmem:[%s0 + $0xd0] sm:$0xf]
  %v77 = vld [vmem:[%s0 + $0xd4] sm:$0xf]
  %v78 = vld [vmem:[%s0 + $0xd8] sm:$0xf]
  %v79 = vld [vmem:[%s0 + $0xdc] sm:$0xf]
  %v80 = vld [vmem:[%s0 + $0xe0] sm:$0xf]
  %v81 = vld [vmem:[%s0 + $0xe4] sm:$0xf]
  %v82 = vld [vmem:[%s0 + $0xe8] sm:$0xf]
  %v83 = vld [vmem:[%s0 + $0xec] sm:$0xf]
  %v84 = vld [vmem:[%s0 + $0xf0] sm:$0xf]
  %v85 = vld [vmem:[%s0 + $0xf4] sm:$0xf]
  %v86 = vld [vmem:[%s0 + $0xf8] sm:$0xf]
  %v87 = vld [vmem:[%s0 + $0xfc] sm:$0xf]
  %v88 = vld [vmem:[%s1] sm:$0xf]
  %v153 = vunpack.c.l.b16 %v24
  %v154 = vunpack.c.l.b16 %v25
  %v155 = vunpack.c.l.b16 %v26
  %v156 = vunpack.c.l.b16 %v27
  %v157 = vunpack.c.l.b16 %v28
  %v158 = vunpack.c.l.b16 %v29
  %v159 = vunpack.c.l.b16 %v30
  %v160 = vunpack.c.l.b16 %v31
  %v161 = vunpack.c.l.b16 %v32
  %v162 = vunpack.c.l.b16 %v33
  %v163 = vunpack.c.l.b16 %v34
  %v164 = vunpack.c.l.b16 %v35
  %v165 = vunpack.c.l.b16 %v36
  %v166 = vunpack.c.l.b16 %v37
  %v167 = vunpack.c.l.b16 %v38
  %v168 = vunpack.c.l.b16 %v39
  %v169 = vunpack.c.l.b16 %v40
  %v170 = vunpack.c.l.b16 %v41
  %v171 = vunpack.c.l.b16 %v42
  %v172 = vunpack.c.l.b16 %v43
  %v173 = vunpack.c.l.b16 %v44
  %v174 = vunpack.c.l.b16 %v45
  %v175 = vunpack.c.l.b16 %v46
  %v176 = vunpack.c.l.b16 %v47
  %v177 = vunpack.c.l.b16 %v48
  %v178 = vunpack.c.l.b16 %v49
  %v179 = vunpack.c.l.b16 %v50
  %v180 = vunpack.c.l.b16 %v51
  %v181 = vunpack.c.l.b16 %v52
  %v182 = vunpack.c.l.b16 %v53
  %v183 = vunpack.c.l.b16 %v54
  %v184 = vunpack.c.l.b16 %v55
  %v185 = vunpack.c.l.b16 %v56
  %v186 = vunpack.c.l.b16 %v57
  %v187 = vunpack.c.l.b16 %v58
  %v188 = vunpack.c.l.b16 %v59
  %v189 = vunpack.c.l.b16 %v60
  %v190 = vunpack.c.l.b16 %v61
  %v191 = vunpack.c.l.b16 %v62
  %v192 = vunpack.c.l.b16 %v63
  %v193 = vunpack.c.l.b16 %v64
  %v194 = vunpack.c.l.b16 %v65
  %v195 = vunpack.c.l.b16 %v66
  %v196 = vunpack.c.l.b16 %v67
  %v197 = vunpack.c.l.b16 %v68
  %v198 = vunpack.c.l.b16 %v69
  %v199 = vunpack.c.l.b16 %v70
  %v200 = vunpack.c.l.b16 %v71
  %v201 = vunpack.c.l.b16 %v72
  %v202 = vunpack.c.l.b16 %v73
  %v203 = vunpack.c.l.b16 %v74
  %v204 = vunpack.c.l.b16 %v75
  %v205 = vunpack.c.l.b16 %v76
  %v206 = vunpack.c.l.b16 %v77
  %v207 = vunpack.c.l.b16 %v78
  %v208 = vunpack.c.l.b16 %v79
  %v209 = vunpack.c.l.b16 %v80
  %v210 = vunpack.c.l.b16 %v81
  %v211 = vunpack.c.l.b16 %v82
  %v212 = vunpack.c.l.b16 %v83
  %v213 = vunpack.c.l.b16 %v84
  %v214 = vunpack.c.l.b16 %v85
  %v215 = vunpack.c.l.b16 %v86
  %v216 = vunpack.c.l.b16 %v87
  %v217 = vpack.c.b16 %v154, %v153
  %v218 = vpack.c.b16 %v156, %v155
  %v219 = vpack.c.b16 %v158, %v157
  %v220 = vpack.c.b16 %v160, %v159
  %v221 = vpack.c.b16 %v162, %v161
  %v222 = vpack.c.b16 %v164, %v163
  %v223 = vpack.c.b16 %v166, %v165
  %v224 = vpack.c.b16 %v168, %v167
  %v225 = vpack.c.b16 %v170, %v169
  %v226 = vpack.c.b16 %v172, %v171
  %v227 = vpack.c.b16 %v174, %v173
  %v228 = vpack.c.b16 %v176, %v175
  %v229 = vpack.c.b16 %v178, %v177
  %v230 = vpack.c.b16 %v180, %v179
  %v231 = vpack.c.b16 %v182, %v181
  %v232 = vpack.c.b16 %v184, %v183
  %v233 = vpack.c.b16 %v186, %v185
  %v234 = vpack.c.b16 %v188, %v187
  %v235 = vpack.c.b16 %v190, %v189
  %v236 = vpack.c.b16 %v192, %v191
  %v237 = vpack.c.b16 %v194, %v193
  %v238 = vpack.c.b16 %v196, %v195
  %v239 = vpack.c.b16 %v198, %v197
  %v240 = vpack.c.b16 %v200, %v199
  %v241 = vpack.c.b16 %v202, %v201
  %v242 = vpack.c.b16 %v204, %v203
  %v243 = vpack.c.b16 %v206, %v205
  %v244 = vpack.c.b16 %v208, %v207
  %v245 = vpack.c.b16 %v210, %v209
  %v246 = vpack.c.b16 %v212, %v211
  %v247 = vpack.c.b16 %v214, %v213
  %v248 = vpack.c.b16 %v216, %v215
  %vm249 = vcmask 64512
  %v251 = vsel %vm249, %v217, 0
  %v254 = vsel %vm249, %v218, 0
  %v257 = vsel %vm249, %v219, 0
  %v260 = vsel %vm249, %v220, 0
  %v263 = vsel %vm249, %v221, 0
  %v266 = vsel %vm249, %v222, 0
  %v269 = vsel %vm249, %v223, 0
  %v272 = vsel %vm249, %v224, 0
  %v275 = vsel %vm249, %v225, 0
  %v278 = vsel %vm249, %v226, 0
  %v281 = vsel %vm249, %v227, 0
  %v284 = vsel %vm249, %v228, 0
  %v287 = vsel %vm249, %v229, 0
  %v290 = vsel %vm249, %v230, 0
  %v293 = vsel %vm249, %v231, 0
  %v296 = vsel %vm249, %v232, 0
  %v299 = vsel %vm249, %v233, 0
  %v302 = vsel %vm249, %v234, 0
  %v305 = vsel %vm249, %v235, 0
  %v308 = vsel %vm249, %v236, 0
  %v311 = vsel %vm249, %v237, 0
  %v314 = vsel %vm249, %v238, 0
  %v317 = vsel %vm249, %v239, 0
  %v320 = vsel %vm249, %v240, 0
  %v323 = vsel %vm249, %v241, 0
  %v326 = vsel %vm249, %v242, 0
  %v329 = vsel %vm249, %v243, 0
  %v332 = vsel %vm249, %v244, 0
  %v335 = vsel %vm249, %v245, 0
  %v338 = vsel %vm249, %v246, 0
  %v341 = vsel %vm249, %v247, 0
  %v344 = vsel %vm249, %v248, 0
  %vm346 = vcmask 1043456
  %v348 = vsel %vm346, %v88, 0
  %350 = vmatprep.subr.bf16.mxu0 0
  %351 = vmatpush1.bf16.msra.mxu0 0
  %352 = vmatprep.subr.bf16.mxu0 0
  %353 = vmatpush1.bf16.msra.mxu0 0
  %354 = vmatprep.subr.bf16.mxu0 0
  %355 = vmatpush1.bf16.msra.mxu0 0
  %356 = vmatprep.subr.bf16.mxu0 0
  %357 = vmatpush1.bf16.msra.mxu0 0
  %358 = vmatprep.subr.bf16.mxu0 0
  %359 = vmatpush1.bf16.msra.mxu0 0
  %360 = vmatprep.subr.bf16.mxu0 0
  %361 = vmatpush1.bf16.msra.mxu0 0
  %362 = vmatprep.subr.bf16.mxu0 0
  %363 = vmatpush1.bf16.msra.mxu0 0
  %364 = vmatprep.subr.bf16.mxu0 0
  %365 = vmatpush1.bf16.msra.mxu0 %v348
  %366 = vmatprep.subr.bf16.mxu0 0
  %367 = vmatpush2.bf16.msra.mxu0 0
  %368 = vmatprep.subr.bf16.mxu0 0
  %369 = vmatpush2.bf16.msra.mxu0 0
  %370 = vmatprep.subr.bf16.mxu0 0
  %371 = vmatpush2.bf16.msra.mxu0 0
  %372 = vmatprep.subr.bf16.mxu0 0
  %373 = vmatpush2.bf16.msra.mxu0 0
  %374 = vmatprep.subr.bf16.mxu0 0
  %375 = vmatpush2.bf16.msra.mxu0 0
  %376 = vmatprep.subr.bf16.mxu0 0
  %377 = vmatpush2.bf16.msra.mxu0 0
  %378 = vmatprep.subr.bf16.mxu0 0
  %379 = vmatpush2.bf16.msra.mxu0 0
  %380 = vmatprep.subr.bf16.mxu0 0
  %381 = vmatpush2.bf16.msra.mxu0 0
  %382 = vmatprep.mubr.bf16.mxu0 0
  %383 = vmatmul.mubr.bf16.gmra.mxu0 %v251
  %v384 = vpop.f32.mrf.mxu0
  %v385 = vadd.f32 0.0, %v384
  %v386 = vpop.f32.mrf.mxu0
  %v387 = vpop.f32.mrf.mxu0
  %v388 = vadd.f32 0.0, %v387
  %v389 = vpop.f32.mrf.mxu0
  %390 = vmatprep.mubr.bf16.mxu0 0
  %391 = vmatmul.mubr.bf16.gmra.mxu0 %v254
  %v392 = vpop.f32.mrf.mxu0
  %v393 = vadd.f32 0.0, %v392
  %v394 = vpop.f32.mrf.mxu0
  %v395 = vpop.f32.mrf.mxu0
  %v396 = vadd.f32 0.0, %v395
  %v397 = vpop.f32.mrf.mxu0
  %398 = vmatprep.mubr.bf16.mxu0 0
  %399 = vmatmul.mubr.bf16.gmra.mxu0 %v257
  %v400 = vpop.f32.mrf.mxu0
  %v401 = vadd.f32 0.0, %v400
  %v402 = vpop.f32.mrf.mxu0
  %v403 = vpop.f32.mrf.mxu0
  %v404 = vadd.f32 0.0, %v403
  %v405 = vpop.f32.mrf.mxu0
  %406 = vmatprep.mubr.bf16.mxu0 0
  %407 = vmatmul.mubr.bf16.gmra.mxu0 %v260
  %v408 = vpop.f32.mrf.mxu0
  %v409 = vadd.f32 0.0, %v408
  %v410 = vpop.f32.mrf.mxu0
  %v411 = vpop.f32.mrf.mxu0
  %v412 = vadd.f32 0.0, %v411
  %v413 = vpop.f32.mrf.mxu0
  %414 = vmatprep.mubr.bf16.mxu0 0
  %415 = vmatmul.mubr.bf16.gmra.mxu0 %v263
  %v416 = vpop.f32.mrf.mxu0
  %v417 = vadd.f32 0.0, %v416
  %v418 = vpop.f32.mrf.mxu0
  %v419 = vpop.f32.mrf.mxu0
  %v420 = vadd.f32 0.0, %v419
  %v421 = vpop.f32.mrf.mxu0
  %422 = vmatprep.mubr.bf16.mxu0 0
  %423 = vmatmul.mubr.bf16.gmra.mxu0 %v266
  %v424 = vpop.f32.mrf.mxu0
  %v425 = vadd.f32 0.0, %v424
  %v426 = vpop.f32.mrf.mxu0
  %v427 = vpop.f32.mrf.mxu0
  %v428 = vadd.f32 0.0, %v427
  %v429 = vpop.f32.mrf.mxu0
  %430 = vmatprep.mubr.bf16.mxu0 0
  %431 = vmatmul.mubr.bf16.gmra.mxu0 %v269
  %v432 = vpop.f32.mrf.mxu0
  %v433 = vadd.f32 0.0, %v432
  %v434 = vpop.f32.mrf.mxu0
  %v435 = vpop.f32.mrf.mxu0
  %v436 = vadd.f32 0.0, %v435
  %v437 = vpop.f32.mrf.mxu0
  %438 = vmatprep.mubr.bf16.mxu0 0
  %439 = vmatmul.mubr.bf16.gmra.mxu0 %v272
  %v440 = vpop.f32.mrf.mxu0
  %v441 = vadd.f32 0.0, %v440
  %v442 = vpop.f32.mrf.mxu0
  %v443 = vpop.f32.mrf.mxu0
  %v444 = vadd.f32 0.0, %v443
  %v445 = vpop.f32.mrf.mxu0
  %446 = vmatprep.mubr.bf16.mxu0 0
  %447 = vmatmul.mubr.bf16.gmra.mxu0 %v275
  %v448 = vpop.f32.mrf.mxu0
  %v449 = vadd.f32 0.0, %v448
  %v450 = vpop.f32.mrf.mxu0
  %v451 = vpop.f32.mrf.mxu0
  %v452 = vadd.f32 0.0, %v451
  %v453 = vpop.f32.mrf.mxu0
  %454 = vmatprep.mubr.bf16.mxu0 0
  %455 = vmatmul.mubr.bf16.gmra.mxu0 %v278
  %v456 = vpop.f32.mrf.mxu0
  %v457 = vadd.f32 0.0, %v456
  %v458 = vpop.f32.mrf.mxu0
  %v459 = vpop.f32.mrf.mxu0
  %v460 = vadd.f32 0.0, %v459
  %v461 = vpop.f32.mrf.mxu0
  %462 = vmatprep.mubr.bf16.mxu0 0
  %463 = vmatmul.mubr.bf16.gmra.mxu0 %v281
  %v464 = vpop.f32.mrf.mxu0
  %v465 = vadd.f32 0.0, %v464
  %v466 = vpop.f32.mrf.mxu0
  %v467 = vpop.f32.mrf.mxu0
  %v468 = vadd.f32 0.0, %v467
  %v469 = vpop.f32.mrf.mxu0
  %470 = vmatprep.mubr.bf16.mxu0 0
  %471 = vmatmul.mubr.bf16.gmra.mxu0 %v284
  %v472 = vpop.f32.mrf.mxu0
  %v473 = vadd.f32 0.0, %v472
  %v474 = vpop.f32.mrf.mxu0
  %v475 = vpop.f32.mrf.mxu0
  %v476 = vadd.f32 0.0, %v475
  %v477 = vpop.f32.mrf.mxu0
  %478 = vmatprep.mubr.bf16.mxu0 0
  %479 = vmatmul.mubr.bf16.gmra.mxu0 %v287
  %v480 = vpop.f32.mrf.mxu0
  %v481 = vadd.f32 0.0, %v480
  %v482 = vpop.f32.mrf.mxu0
  %v483 = vpop.f32.mrf.mxu0
  %v484 = vadd.f32 0.0, %v483
  %v485 = vpop.f32.mrf.mxu0
  %486 = vmatprep.mubr.bf16.mxu0 0
  %487 = vmatmul.mubr.bf16.gmra.mxu0 %v290
  %v488 = vpop.f32.mrf.mxu0
  %v489 = vadd.f32 0.0, %v488
  %v490 = vpop.f32.mrf.mxu0
  %v491 = vpop.f32.mrf.mxu0
  %v492 = vadd.f32 0.0, %v491
  %v493 = vpop.f32.mrf.mxu0
  %494 = vmatprep.mubr.bf16.mxu0 0
  %495 = vmatmul.mubr.bf16.gmra.mxu0 %v293
  %v496 = vpop.f32.mrf.mxu0
  %v497 = vadd.f32 0.0, %v496
  %v498 = vpop.f32.mrf.mxu0
  %v499 = vpop.f32.mrf.mxu0
  %v500 = vadd.f32 0.0, %v499
  %v501 = vpop.f32.mrf.mxu0
  %502 = vmatprep.mubr.bf16.mxu0 0
  %503 = vmatmul.mubr.bf16.gmra.mxu0 %v296
  %v504 = vpop.f32.mrf.mxu0
  %v505 = vadd.f32 0.0, %v504
  %v506 = vpop.f32.mrf.mxu0
  %v507 = vpop.f32.mrf.mxu0
  %v508 = vadd.f32 0.0, %v507
  %v509 = vpop.f32.mrf.mxu0
  %510 = vmatprep.mubr.bf16.mxu0 0
  %511 = vmatmul.mubr.bf16.gmra.mxu0 %v299
  %v512 = vpop.f32.mrf.mxu0
  %v513 = vadd.f32 0.0, %v512
  %v514 = vpop.f32.mrf.mxu0
  %v515 = vpop.f32.mrf.mxu0
  %v516 = vadd.f32 0.0, %v515
  %v517 = vpop.f32.mrf.mxu0
  %518 = vmatprep.mubr.bf16.mxu0 0
  %519 = vmatmul.mubr.bf16.gmra.mxu0 %v302
  %v520 = vpop.f32.mrf.mxu0
  %v521 = vadd.f32 0.0, %v520
  %v522 = vpop.f32.mrf.mxu0
  %v523 = vpop.f32.mrf.mxu0
  %v524 = vadd.f32 0.0, %v523
  %v525 = vpop.f32.mrf.mxu0
  %526 = vmatprep.mubr.bf16.mxu0 0
  %527 = vmatmul.mubr.bf16.gmra.mxu0 %v305
  %v528 = vpop.f32.mrf.mxu0
  %v529 = vadd.f32 0.0, %v528
  %v530 = vpop.f32.mrf.mxu0
  %v531 = vpop.f32.mrf.mxu0
  %v532 = vadd.f32 0.0, %v531
  %v533 = vpop.f32.mrf.mxu0
  %534 = vmatprep.mubr.bf16.mxu0 0
  %535 = vmatmul.mubr.bf16.gmra.mxu0 %v308
  %v536 = vpop.f32.mrf.mxu0
  %v537 = vadd.f32 0.0, %v536
  %v538 = vpop.f32.mrf.mxu0
  %v539 = vpop.f32.mrf.mxu0
  %v540 = vadd.f32 0.0, %v539
  %v541 = vpop.f32.mrf.mxu0
  %542 = vmatprep.mubr.bf16.mxu0 0
  %543 = vmatmul.mubr.bf16.gmra.mxu0 %v311
  %v544 = vpop.f32.mrf.mxu0
  %v545 = vadd.f32 0.0, %v544
  %v546 = vpop.f32.mrf.mxu0
  %v547 = vpop.f32.mrf.mxu0
  %v548 = vadd.f32 0.0, %v547
  %v549 = vpop.f32.mrf.mxu0
  %550 = vmatprep.mubr.bf16.mxu0 0
  %551 = vmatmul.mubr.bf16.gmra.mxu0 %v314
  %v552 = vpop.f32.mrf.mxu0
  %v553 = vadd.f32 0.0, %v552
  %v554 = vpop.f32.mrf.mxu0
  %v555 = vpop.f32.mrf.mxu0
  %v556 = vadd.f32 0.0, %v555
  %v557 = vpop.f32.mrf.mxu0
  %558 = vmatprep.mubr.bf16.mxu0 0
  %559 = vmatmul.mubr.bf16.gmra.mxu0 %v317
  %v560 = vpop.f32.mrf.mxu0
  %v561 = vadd.f32 0.0, %v560
  %v562 = vpop.f32.mrf.mxu0
  %v563 = vpop.f32.mrf.mxu0
  %v564 = vadd.f32 0.0, %v563
  %v565 = vpop.f32.mrf.mxu0
  %566 = vmatprep.mubr.bf16.mxu0 0
  %567 = vmatmul.mubr.bf16.gmra.mxu0 %v320
  %v568 = vpop.f32.mrf.mxu0
  %v569 = vadd.f32 0.0, %v568
  %v570 = vpop.f32.mrf.mxu0
  %v571 = vpop.f32.mrf.mxu0
  %v572 = vadd.f32 0.0, %v571
  %v573 = vpop.f32.mrf.mxu0
  %574 = vmatprep.mubr.bf16.mxu0 0
  %575 = vmatmul.mubr.bf16.gmra.mxu0 %v323
  %v576 = vpop.f32.mrf.mxu0
  %v577 = vadd.f32 0.0, %v576
  %v578 = vpop.f32.mrf.mxu0
  %v579 = vpop.f32.mrf.mxu0
  %v580 = vadd.f32 0.0, %v579
  %v581 = vpop.f32.mrf.mxu0
  %582 = vmatprep.mubr.bf16.mxu0 0
  %583 = vmatmul.mubr.bf16.gmra.mxu0 %v326
  %v584 = vpop.f32.mrf.mxu0
  %v585 = vadd.f32 0.0, %v584
  %v586 = vpop.f32.mrf.mxu0
  %v587 = vpop.f32.mrf.mxu0
  %v588 = vadd.f32 0.0, %v587
  %v589 = vpop.f32.mrf.mxu0
  %590 = vmatprep.mubr.bf16.mxu0 0
  %591 = vmatmul.mubr.bf16.gmra.mxu0 %v329
  %v592 = vpop.f32.mrf.mxu0
  %v593 = vadd.f32 0.0, %v592
  %v594 = vpop.f32.mrf.mxu0
  %v595 = vpop.f32.mrf.mxu0
  %v596 = vadd.f32 0.0, %v595
  %v597 = vpop.f32.mrf.mxu0
  %598 = vmatprep.mubr.bf16.mxu0 0
  %599 = vmatmul.mubr.bf16.gmra.mxu0 %v332
  %v600 = vpop.f32.mrf.mxu0
  %v601 = vadd.f32 0.0, %v600
  %v602 = vpop.f32.mrf.mxu0
  %v603 = vpop.f32.mrf.mxu0
  %v604 = vadd.f32 0.0, %v603
  %v605 = vpop.f32.mrf.mxu0
  %606 = vmatprep.mubr.bf16.mxu0 0
  %607 = vmatmul.mubr.bf16.gmra.mxu0 %v335
  %v608 = vpop.f32.mrf.mxu0
  %v609 = vadd.f32 0.0, %v608
  %v610 = vpop.f32.mrf.mxu0
  %v611 = vpop.f32.mrf.mxu0
  %v612 = vadd.f32 0.0, %v611
  %v613 = vpop.f32.mrf.mxu0
  %614 = vmatprep.mubr.bf16.mxu0 0
  %615 = vmatmul.mubr.bf16.gmra.mxu0 %v338
  %v616 = vpop.f32.mrf.mxu0
  %v617 = vadd.f32 0.0, %v616
  %v618 = vpop.f32.mrf.mxu0
  %v619 = vpop.f32.mrf.mxu0
  %v620 = vadd.f32 0.0, %v619
  %v621 = vpop.f32.mrf.mxu0
  %622 = vmatprep.mubr.bf16.mxu0 0
  %623 = vmatmul.mubr.bf16.gmra.mxu0 %v341
  %v624 = vpop.f32.mrf.mxu0
  %v625 = vadd.f32 0.0, %v624
  %v626 = vpop.f32.mrf.mxu0
  %v627 = vpop.f32.mrf.mxu0
  %v628 = vadd.f32 0.0, %v627
  %v629 = vpop.f32.mrf.mxu0
  %630 = vmatprep.mubr.bf16.mxu0 0
  %631 = vmatmul.mubr.bf16.gmra.mxu0 %v344
  %v632 = vpop.f32.mrf.mxu0
  %v633 = vadd.f32 0.0, %v632
  %v634 = vpop.f32.mrf.mxu0
  %v635 = vpop.f32.mrf.mxu0
  %v636 = vadd.f32 0.0, %v635
  %v637 = vpop.f32.mrf.mxu0
  %638 = vdwg.mxu0
  %v639 = vmax.f32 %v385, 0.0
  %v640 = vmax.f32 %v388, 0.0
  %v641 = vmax.f32 %v393, 0.0
  %v642 = vmax.f32 %v396, 0.0
  %v643 = vmax.f32 %v401, 0.0
  %v644 = vmax.f32 %v404, 0.0
  %v645 = vmax.f32 %v409, 0.0
  %v646 = vmax.f32 %v412, 0.0
  %v647 = vmax.f32 %v417, 0.0
  %v648 = vmax.f32 %v420, 0.0
  %v649 = vmax.f32 %v425, 0.0
  %v650 = vmax.f32 %v428, 0.0
  %v651 = vmax.f32 %v433, 0.0
  %v652 = vmax.f32 %v436, 0.0
  %v653 = vmax.f32 %v441, 0.0
  %v654 = vmax.f32 %v444, 0.0
  %v655 = vmax.f32 %v449, 0.0
  %v656 = vmax.f32 %v452, 0.0
  %v657 = vmax.f32 %v457, 0.0
  %v658 = vmax.f32 %v460, 0.0
  %v659 = vmax.f32 %v465, 0.0
  %v660 = vmax.f32 %v468, 0.0
  %v661 = vmax.f32 %v473, 0.0
  %v662 = vmax.f32 %v476, 0.0
  %v663 = vmax.f32 %v481, 0.0
  %v664 = vmax.f32 %v484, 0.0
  %v665 = vmax.f32 %v489, 0.0
  %v666 = vmax.f32 %v492, 0.0
  %v667 = vmax.f32 %v497, 0.0
  %v668 = vmax.f32 %v500, 0.0
  %v669 = vmax.f32 %v505, 0.0
  %v670 = vmax.f32 %v508, 0.0
  %v671 = vmax.f32 %v513, 0.0
  %v672 = vmax.f32 %v516, 0.0
  %v673 = vmax.f32 %v521, 0.0
  %v674 = vmax.f32 %v524, 0.0
  %v675 = vmax.f32 %v529, 0.0
  %v676 = vmax.f32 %v532, 0.0
  %v677 = vmax.f32 %v537, 0.0
  %v678 = vmax.f32 %v540, 0.0
  %v679 = vmax.f32 %v545, 0.0
  %v680 = vmax.f32 %v548, 0.0
  %v681 = vmax.f32 %v553, 0.0
  %v682 = vmax.f32 %v556, 0.0
  %v683 = vmax.f32 %v561, 0.0
  %v684 = vmax.f32 %v564, 0.0
  %v685 = vmax.f32 %v569, 0.0
  %v686 = vmax.f32 %v572, 0.0
  %v687 = vmax.f32 %v577, 0.0
  %v688 = vmax.f32 %v580, 0.0
  %v689 = vmax.f32 %v585, 0.0
  %v690 = vmax.f32 %v588, 0.0
  %v691 = vmax.f32 %v593, 0.0
  %v692 = vmax.f32 %v596, 0.0
  %v693 = vmax.f32 %v601, 0.0
  %v694 = vmax.f32 %v604, 0.0
  %v695 = vmax.f32 %v609, 0.0
  %v696 = vmax.f32 %v612, 0.0
  %v697 = vmax.f32 %v617, 0.0
  %v698 = vmax.f32 %v620, 0.0
  %v699 = vmax.f32 %v625, 0.0
  %v700 = vmax.f32 %v628, 0.0
  %v701 = vmax.f32 %v633, 0.0
  %v702 = vmax.f32 %v636, 0.0
  %v703 = vpack.c.bf16 %v640, %v639
  %v704 = vpack.c.bf16 %v642, %v641
  %v705 = vpack.c.bf16 %v644, %v643
  %v706 = vpack.c.bf16 %v646, %v645
  %v707 = vpack.c.bf16 %v648, %v647
  %v708 = vpack.c.bf16 %v650, %v649
  %v709 = vpack.c.bf16 %v652, %v651
  %v710 = vpack.c.bf16 %v654, %v653
  %v711 = vpack.c.bf16 %v656, %v655
  %v712 = vpack.c.bf16 %v658, %v657
  %v713 = vpack.c.bf16 %v660, %v659
  %v714 = vpack.c.bf16 %v662, %v661
  %v715 = vpack.c.bf16 %v664, %v663
  %v716 = vpack.c.bf16 %v666, %v665
  %v717 = vpack.c.bf16 %v668, %v667
  %v718 = vpack.c.bf16 %v670, %v669
  %v719 = vpack.c.bf16 %v672, %v671
  %v720 = vpack.c.bf16 %v674, %v673
  %v721 = vpack.c.bf16 %v676, %v675
  %v722 = vpack.c.bf16 %v678, %v677
  %v723 = vpack.c.bf16 %v680, %v679
  %v724 = vpack.c.bf16 %v682, %v681
  %v725 = vpack.c.bf16 %v684, %v683
  %v726 = vpack.c.bf16 %v686, %v685
  %v727 = vpack.c.bf16 %v688, %v687
  %v728 = vpack.c.bf16 %v690, %v689
  %v729 = vpack.c.bf16 %v692, %v691
  %v730 = vpack.c.bf16 %v694, %v693
  %v731 = vpack.c.bf16 %v696, %v695
  %v732 = vpack.c.bf16 %v698, %v697
  %v733 = vpack.c.bf16 %v700, %v699
  %v734 = vpack.c.bf16 %v702, %v701
  %v735 = vld [vmem:[%s2] sm:$0xf]
  %v736 = vld [vmem:[%s2 + $0x4] sm:$0xf]
  %v737 = vld [vmem:[%s2 + $0x8] sm:$0xf]
  %v738 = vld [vmem:[%s2 + $0xc] sm:$0xf]
  %v739 = vld [vmem:[%s2 + $0x10] sm:$0xf]
  %v740 = vld [vmem:[%s2 + $0x14] sm:$0xf]
  %v741 = vld [vmem:[%s2 + $0x18] sm:$0xf]
  %v742 = vld [vmem:[%s2 + $0x1c] sm:$0xf]
  %v743 = vld [vmem:[%s2 + $0x20] sm:$0xf]
  %v744 = vld [vmem:[%s2 + $0x24] sm:$0xf]
  %v745 = vld [vmem:[%s2 + $0x28] sm:$0xf]
  %v746 = vld [vmem:[%s2 + $0x2c] sm:$0xf]
  %v747 = vld [vmem:[%s2 + $0x30] sm:$0xf]
  %v748 = vld [vmem:[%s2 + $0x34] sm:$0xf]
  %v749 = vld [vmem:[%s2 + $0x38] sm:$0xf]
  %v750 = vld [vmem:[%s2 + $0x3c] sm:$0xf]
  %v751 = vld [vmem:[%s3] sm:$0x1]
  %v753 = vlaneseq
  %v754 = vshrl.u32 %v753, 7
  %v755 = vsub.s32 0, %v754
  %v756 = vrot.slane %v751, %v755
  %v774 = vunpack.c.l.b16 %v735
  %v775 = vunpack.c.l.b16 %v736
  %v776 = vunpack.c.l.b16 %v737
  %v777 = vunpack.c.l.b16 %v738
  %v778 = vunpack.c.l.b16 %v739
  %v779 = vunpack.c.l.b16 %v740
  %v780 = vunpack.c.l.b16 %v741
  %v781 = vunpack.c.l.b16 %v742
  %v782 = vunpack.c.l.b16 %v743
  %v783 = vunpack.c.l.b16 %v744
  %v784 = vunpack.c.l.b16 %v745
  %v785 = vunpack.c.l.b16 %v746
  %v786 = vunpack.c.l.b16 %v747
  %v787 = vunpack.c.l.b16 %v748
  %v788 = vunpack.c.l.b16 %v749
  %v789 = vunpack.c.l.b16 %v750
  %v790 = vpack.c.b16 %v775, %v774
  %v791 = vpack.c.b16 %v777, %v776
  %v792 = vpack.c.b16 %v779, %v778
  %v793 = vpack.c.b16 %v781, %v780
  %v794 = vpack.c.b16 %v783, %v782
  %v795 = vpack.c.b16 %v785, %v784
  %v796 = vpack.c.b16 %v787, %v786
  %v797 = vpack.c.b16 %v789, %v788
  %806 = vmatprep.subr.bf16.mxu0 0
  %807 = vmatpush1.bf16.msra.mxu0 %v797
  %808 = vmatprep.subr.bf16.mxu0 0
  %809 = vmatpush1.bf16.msra.mxu0 %v796
  %810 = vmatprep.subr.bf16.mxu0 0
  %811 = vmatpush1.bf16.msra.mxu0 %v795
  %812 = vmatprep.subr.bf16.mxu0 0
  %813 = vmatpush1.bf16.msra.mxu0 %v794
  %814 = vmatprep.subr.bf16.mxu0 0
  %815 = vmatpush1.bf16.msra.mxu0 %v793
  %816 = vmatprep.subr.bf16.mxu0 0
  %817 = vmatpush1.bf16.msra.mxu0 %v792
  %818 = vmatprep.subr.bf16.mxu0 0
  %819 = vmatpush1.bf16.msra.mxu0 %v791
  %820 = vmatprep.subr.bf16.mxu0 0
  %821 = vmatpush1.bf16.msra.mxu0 %v790
  %822 = vmatprep.subr.bf16.mxu0 0
  %823 = vmatpush2.bf16.msra.mxu0 0
  %824 = vmatprep.subr.bf16.mxu0 0
  %825 = vmatpush2.bf16.msra.mxu0 0
  %826 = vmatprep.subr.bf16.mxu0 0
  %827 = vmatpush2.bf16.msra.mxu0 0
  %828 = vmatprep.subr.bf16.mxu0 0
  %829 = vmatpush2.bf16.msra.mxu0 0
  %830 = vmatprep.subr.bf16.mxu0 0
  %831 = vmatpush2.bf16.msra.mxu0 0
  %832 = vmatprep.subr.bf16.mxu0 0
  %833 = vmatpush2.bf16.msra.mxu0 0
  %834 = vmatprep.subr.bf16.mxu0 0
  %835 = vmatpush2.bf16.msra.mxu0 0
  %836 = vmatprep.subr.bf16.mxu0 0
  %837 = vmatpush2.bf16.msra.mxu0 0
  %838 = vmatprep.mubr.bf16.mxu0 0
  %839 = vmatmul.mubr.bf16.gmra.mxu0 %v703
  %v840 = vpop.f32.mrf.mxu0
  %v841 = vadd.f32 %v756, %v840
  %v842 = vpop.f32.mrf.mxu0
  %v843 = vpop.f32.mrf.mxu0
  %v844 = vadd.f32 %v756, %v843
  %v845 = vpop.f32.mrf.mxu0
  %846 = vmatprep.mubr.bf16.mxu0 0
  %847 = vmatmul.mubr.bf16.gmra.mxu0 %v704
  %v848 = vpop.f32.mrf.mxu0
  %v849 = vadd.f32 %v756, %v848
  %v850 = vpop.f32.mrf.mxu0
  %v851 = vpop.f32.mrf.mxu0
  %v852 = vadd.f32 %v756, %v851
  %v853 = vpop.f32.mrf.mxu0
  %854 = vmatprep.mubr.bf16.mxu0 0
  %855 = vmatmul.mubr.bf16.gmra.mxu0 %v705
  %v856 = vpop.f32.mrf.mxu0
  %v857 = vadd.f32 %v756, %v856
  %v858 = vpop.f32.mrf.mxu0
  %v859 = vpop.f32.mrf.mxu0
  %v860 = vadd.f32 %v756, %v859
  %v861 = vpop.f32.mrf.mxu0
  %862 = vmatprep.mubr.bf16.mxu0 0
  %863 = vmatmul.mubr.bf16.gmra.mxu0 %v706
  %v864 = vpop.f32.mrf.mxu0
  %v865 = vadd.f32 %v756, %v864
  %v866 = vpop.f32.mrf.mxu0
  %v867 = vpop.f32.mrf.mxu0
  %v868 = vadd.f32 %v756, %v867
  %v869 = vpop.f32.mrf.mxu0
  %870 = vmatprep.mubr.bf16.mxu0 0
  %871 = vmatmul.mubr.bf16.gmra.mxu0 %v707
  %v872 = vpop.f32.mrf.mxu0
  %v873 = vadd.f32 %v756, %v872
  %v874 = vpop.f32.mrf.mxu0
  %v875 = vpop.f32.mrf.mxu0
  %v876 = vadd.f32 %v756, %v875
  %v877 = vpop.f32.mrf.mxu0
  %878 = vmatprep.mubr.bf16.mxu0 0
  %879 = vmatmul.mubr.bf16.gmra.mxu0 %v708
  %v880 = vpop.f32.mrf.mxu0
  %v881 = vadd.f32 %v756, %v880
  %v882 = vpop.f32.mrf.mxu0
  %v883 = vpop.f32.mrf.mxu0
  %v884 = vadd.f32 %v756, %v883
  %v885 = vpop.f32.mrf.mxu0
  %886 = vmatprep.mubr.bf16.mxu0 0
  %887 = vmatmul.mubr.bf16.gmra.mxu0 %v709
  %v888 = vpop.f32.mrf.mxu0
  %v889 = vadd.f32 %v756, %v888
  %v890 = vpop.f32.mrf.mxu0
  %v891 = vpop.f32.mrf.mxu0
  %v892 = vadd.f32 %v756, %v891
  %v893 = vpop.f32.mrf.mxu0
  %894 = vmatprep.mubr.bf16.mxu0 0
  %895 = vmatmul.mubr.bf16.gmra.mxu0 %v710
  %v896 = vpop.f32.mrf.mxu0
  %v897 = vadd.f32 %v756, %v896
  %v898 = vpop.f32.mrf.mxu0
  %v899 = vpop.f32.mrf.mxu0
  %v900 = vadd.f32 %v756, %v899
  %v901 = vpop.f32.mrf.mxu0
  %902 = vmatprep.mubr.bf16.mxu0 0
  %903 = vmatmul.mubr.bf16.gmra.mxu0 %v711
  %v904 = vpop.f32.mrf.mxu0
  %v905 = vadd.f32 %v756, %v904
  %v906 = vpop.f32.mrf.mxu0
  %v907 = vpop.f32.mrf.mxu0
  %v908 = vadd.f32 %v756, %v907
  %v909 = vpop.f32.mrf.mxu0
  %910 = vmatprep.mubr.bf16.mxu0 0
  %911 = vmatmul.mubr.bf16.gmra.mxu0 %v712
  %v912 = vpop.f32.mrf.mxu0
  %v913 = vadd.f32 %v756, %v912
  %v914 = vpop.f32.mrf.mxu0
  %v915 = vpop.f32.mrf.mxu0
  %v916 = vadd.f32 %v756, %v915
  %v917 = vpop.f32.mrf.mxu0
  %918 = vmatprep.mubr.bf16.mxu0 0
  %919 = vmatmul.mubr.bf16.gmra.mxu0 %v713
  %v920 = vpop.f32.mrf.mxu0
  %v921 = vadd.f32 %v756, %v920
  %v922 = vpop.f32.mrf.mxu0
  %v923 = vpop.f32.mrf.mxu0
  %v924 = vadd.f32 %v756, %v923
  %v925 = vpop.f32.mrf.mxu0
  %926 = vmatprep.mubr.bf16.mxu0 0
  %927 = vmatmul.mubr.bf16.gmra.mxu0 %v714
  %v928 = vpop.f32.mrf.mxu0
  %v929 = vadd.f32 %v756, %v928
  %v930 = vpop.f32.mrf.mxu0
  %v931 = vpop.f32.mrf.mxu0
  %v932 = vadd.f32 %v756, %v931
  %v933 = vpop.f32.mrf.mxu0
  %934 = vmatprep.mubr.bf16.mxu0 0
  %935 = vmatmul.mubr.bf16.gmra.mxu0 %v715
  %v936 = vpop.f32.mrf.mxu0
  %v937 = vadd.f32 %v756, %v936
  %v938 = vpop.f32.mrf.mxu0
  %v939 = vpop.f32.mrf.mxu0
  %v940 = vadd.f32 %v756, %v939
  %v941 = vpop.f32.mrf.mxu0
  %942 = vmatprep.mubr.bf16.mxu0 0
  %943 = vmatmul.mubr.bf16.gmra.mxu0 %v716
  %v944 = vpop.f32.mrf.mxu0
  %v945 = vadd.f32 %v756, %v944
  %v946 = vpop.f32.mrf.mxu0
  %v947 = vpop.f32.mrf.mxu0
  %v948 = vadd.f32 %v756, %v947
  %v949 = vpop.f32.mrf.mxu0
  %950 = vmatprep.mubr.bf16.mxu0 0
  %951 = vmatmul.mubr.bf16.gmra.mxu0 %v717
  %v952 = vpop.f32.mrf.mxu0
  %v953 = vadd.f32 %v756, %v952
  %v954 = vpop.f32.mrf.mxu0
  %v955 = vpop.f32.mrf.mxu0
  %v956 = vadd.f32 %v756, %v955
  %v957 = vpop.f32.mrf.mxu0
  %958 = vmatprep.mubr.bf16.mxu0 0
  %959 = vmatmul.mubr.bf16.gmra.mxu0 %v718
  %v960 = vpop.f32.mrf.mxu0
  %v961 = vadd.f32 %v756, %v960
  %v962 = vpop.f32.mrf.mxu0
  %v963 = vpop.f32.mrf.mxu0
  %v964 = vadd.f32 %v756, %v963
  %v965 = vpop.f32.mrf.mxu0
  %966 = vmatprep.mubr.bf16.mxu0 0
  %967 = vmatmul.mubr.bf16.gmra.mxu0 %v719
  %v968 = vpop.f32.mrf.mxu0
  %v969 = vadd.f32 %v756, %v968
  %v970 = vpop.f32.mrf.mxu0
  %v971 = vpop.f32.mrf.mxu0
  %v972 = vadd.f32 %v756, %v971
  %v973 = vpop.f32.mrf.mxu0
  %974 = vmatprep.mubr.bf16.mxu0 0
  %975 = vmatmul.mubr.bf16.gmra.mxu0 %v720
  %v976 = vpop.f32.mrf.mxu0
  %v977 = vadd.f32 %v756, %v976
  %v978 = vpop.f32.mrf.mxu0
  %v979 = vpop.f32.mrf.mxu0
  %v980 = vadd.f32 %v756, %v979
  %v981 = vpop.f32.mrf.mxu0
  %982 = vmatprep.mubr.bf16.mxu0 0
  %983 = vmatmul.mubr.bf16.gmra.mxu0 %v721
  %v984 = vpop.f32.mrf.mxu0
  %v985 = vadd.f32 %v756, %v984
  %v986 = vpop.f32.mrf.mxu0
  %v987 = vpop.f32.mrf.mxu0
  %v988 = vadd.f32 %v756, %v987
  %v989 = vpop.f32.mrf.mxu0
  %990 = vmatprep.mubr.bf16.mxu0 0
  %991 = vmatmul.mubr.bf16.gmra.mxu0 %v722
  %v992 = vpop.f32.mrf.mxu0
  %v993 = vadd.f32 %v756, %v992
  %v994 = vpop.f32.mrf.mxu0
  %v995 = vpop.f32.mrf.mxu0
  %v996 = vadd.f32 %v756, %v995
  %v997 = vpop.f32.mrf.mxu0
  %998 = vmatprep.mubr.bf16.mxu0 0
  %999 = vmatmul.mubr.bf16.gmra.mxu0 %v723
  %v1000 = vpop.f32.mrf.mxu0
  %v1001 = vadd.f32 %v756, %v1000
  %v1002 = vpop.f32.mrf.mxu0
  %v1003 = vpop.f32.mrf.mxu0
  %v1004 = vadd.f32 %v756, %v1003
  %v1005 = vpop.f32.mrf.mxu0
  %1006 = vmatprep.mubr.bf16.mxu0 0
  %1007 = vmatmul.mubr.bf16.gmra.mxu0 %v724
  %v1008 = vpop.f32.mrf.mxu0
  %v1009 = vadd.f32 %v756, %v1008
  %v1010 = vpop.f32.mrf.mxu0
  %v1011 = vpop.f32.mrf.mxu0
  %v1012 = vadd.f32 %v756, %v1011
  %v1013 = vpop.f32.mrf.mxu0
  %1014 = vmatprep.mubr.bf16.mxu0 0
  %1015 = vmatmul.mubr.bf16.gmra.mxu0 %v725
  %v1016 = vpop.f32.mrf.mxu0
  %v1017 = vadd.f32 %v756, %v1016
  %v1018 = vpop.f32.mrf.mxu0
  %v1019 = vpop.f32.mrf.mxu0
  %v1020 = vadd.f32 %v756, %v1019
  %v1021 = vpop.f32.mrf.mxu0
  %1022 = vmatprep.mubr.bf16.mxu0 0
  %1023 = vmatmul.mubr.bf16.gmra.mxu0 %v726
  %v1024 = vpop.f32.mrf.mxu0
  %v1025 = vadd.f32 %v756, %v1024
  %v1026 = vpop.f32.mrf.mxu0
  %v1027 = vpop.f32.mrf.mxu0
  %v1028 = vadd.f32 %v756, %v1027
  %v1029 = vpop.f32.mrf.mxu0
  %1030 = vmatprep.mubr.bf16.mxu0 0
  %1031 = vmatmul.mubr.bf16.gmra.mxu0 %v727
  %v1032 = vpop.f32.mrf.mxu0
  %v1033 = vadd.f32 %v756, %v1032
  %v1034 = vpop.f32.mrf.mxu0
  %v1035 = vpop.f32.mrf.mxu0
  %v1036 = vadd.f32 %v756, %v1035
  %v1037 = vpop.f32.mrf.mxu0
  %1038 = vmatprep.mubr.bf16.mxu0 0
  %1039 = vmatmul.mubr.bf16.gmra.mxu0 %v728
  %v1040 = vpop.f32.mrf.mxu0
  %v1041 = vadd.f32 %v756, %v1040
  %v1042 = vpop.f32.mrf.mxu0
  %v1043 = vpop.f32.mrf.mxu0
  %v1044 = vadd.f32 %v756, %v1043
  %v1045 = vpop.f32.mrf.mxu0
  %1046 = vmatprep.mubr.bf16.mxu0 0
  %1047 = vmatmul.mubr.bf16.gmra.mxu0 %v729
  %v1048 = vpop.f32.mrf.mxu0
  %v1049 = vadd.f32 %v756, %v1048
  %v1050 = vpop.f32.mrf.mxu0
  %v1051 = vpop.f32.mrf.mxu0
  %v1052 = vadd.f32 %v756, %v1051
  %v1053 = vpop.f32.mrf.mxu0
  %1054 = vmatprep.mubr.bf16.mxu0 0
  %1055 = vmatmul.mubr.bf16.gmra.mxu0 %v730
  %v1056 = vpop.f32.mrf.mxu0
  %v1057 = vadd.f32 %v756, %v1056
  %v1058 = vpop.f32.mrf.mxu0
  %v1059 = vpop.f32.mrf.mxu0
  %v1060 = vadd.f32 %v756, %v1059
  %v1061 = vpop.f32.mrf.mxu0
  %1062 = vmatprep.mubr.bf16.mxu0 0
  %1063 = vmatmul.mubr.bf16.gmra.mxu0 %v731
  %v1064 = vpop.f32.mrf.mxu0
  %v1065 = vadd.f32 %v756, %v1064
  %v1066 = vpop.f32.mrf.mxu0
  %v1067 = vpop.f32.mrf.mxu0
  %v1068 = vadd.f32 %v756, %v1067
  %v1069 = vpop.f32.mrf.mxu0
  %1070 = vmatprep.mubr.bf16.mxu0 0
  %1071 = vmatmul.mubr.bf16.gmra.mxu0 %v732
  %v1072 = vpop.f32.mrf.mxu0
  %v1073 = vadd.f32 %v756, %v1072
  %v1074 = vpop.f32.mrf.mxu0
  %v1075 = vpop.f32.mrf.mxu0
  %v1076 = vadd.f32 %v756, %v1075
  %v1077 = vpop.f32.mrf.mxu0
  %1078 = vmatprep.mubr.bf16.mxu0 0
  %1079 = vmatmul.mubr.bf16.gmra.mxu0 %v733
  %v1080 = vpop.f32.mrf.mxu0
  %v1081 = vadd.f32 %v756, %v1080
  %v1082 = vpop.f32.mrf.mxu0
  %v1083 = vpop.f32.mrf.mxu0
  %v1084 = vadd.f32 %v756, %v1083
  %v1085 = vpop.f32.mrf.mxu0
  %1086 = vmatprep.mubr.bf16.mxu0 0
  %1087 = vmatmul.mubr.bf16.gmra.mxu0 %v734
  %v1088 = vpop.f32.mrf.mxu0
  %v1089 = vadd.f32 %v756, %v1088
  %v1090 = vpop.f32.mrf.mxu0
  %v1091 = vpop.f32.mrf.mxu0
  %v1092 = vadd.f32 %v756, %v1091
  %v1093 = vpop.f32.mrf.mxu0
  %1094 = vdwg.mxu0
  %v1095 = vmax.f32 %v841, 0.0
  %v1096 = vmax.f32 %v844, 0.0
  %v1097 = vmax.f32 %v849, 0.0
  %v1098 = vmax.f32 %v852, 0.0
  %v1099 = vmax.f32 %v857, 0.0
  %v1100 = vmax.f32 %v860, 0.0
  %v1101 = vmax.f32 %v865, 0.0
  %v1102 = vmax.f32 %v868, 0.0
  %v1103 = vmax.f32 %v873, 0.0
  %v1104 = vmax.f32 %v876, 0.0
  %v1105 = vmax.f32 %v881, 0.0
  %v1106 = vmax.f32 %v884, 0.0
  %v1107 = vmax.f32 %v889, 0.0
  %v1108 = vmax.f32 %v892, 0.0
  %v1109 = vmax.f32 %v897, 0.0
  %v1110 = vmax.f32 %v900, 0.0
  %v1111 = vmax.f32 %v905, 0.0
  %v1112 = vmax.f32 %v908, 0.0
  %v1113 = vmax.f32 %v913, 0.0
  %v1114 = vmax.f32 %v916, 0.0
  %v1115 = vmax.f32 %v921, 0.0
  %v1116 = vmax.f32 %v924, 0.0
  %v1117 = vmax.f32 %v929, 0.0
  %v1118 = vmax.f32 %v932, 0.0
  %v1119 = vmax.f32 %v937, 0.0
  %v1120 = vmax.f32 %v940, 0.0
  %v1121 = vmax.f32 %v945, 0.0
  %v1122 = vmax.f32 %v948, 0.0
  %v1123 = vmax.f32 %v953, 0.0
  %v1124 = vmax.f32 %v956, 0.0
  %v1125 = vmax.f32 %v961, 0.0
  %v1126 = vmax.f32 %v964, 0.0
  %v1127 = vmax.f32 %v969, 0.0
  %v1128 = vmax.f32 %v972, 0.0
  %v1129 = vmax.f32 %v977, 0.0
  %v1130 = vmax.f32 %v980, 0.0
  %v1131 = vmax.f32 %v985, 0.0
  %v1132 = vmax.f32 %v988, 0.0
  %v1133 = vmax.f32 %v993, 0.0
  %v1134 = vmax.f32 %v996, 0.0
  %v1135 = vmax.f32 %v1001, 0.0
  %v1136 = vmax.f32 %v1004, 0.0
  %v1137 = vmax.f32 %v1009, 0.0
  %v1138 = vmax.f32 %v1012, 0.0
  %v1139 = vmax.f32 %v1017, 0.0
  %v1140 = vmax.f32 %v1020, 0.0
  %v1141 = vmax.f32 %v1025, 0.0
  %v1142 = vmax.f32 %v1028, 0.0
  %v1143 = vmax.f32 %v1033, 0.0
  %v1144 = vmax.f32 %v1036, 0.0
  %v1145 = vmax.f32 %v1041, 0.0
  %v1146 = vmax.f32 %v1044, 0.0
  %v1147 = vmax.f32 %v1049, 0.0
  %v1148 = vmax.f32 %v1052, 0.0
  %v1149 = vmax.f32 %v1057, 0.0
  %v1150 = vmax.f32 %v1060, 0.0
  %v1151 = vmax.f32 %v1065, 0.0
  %v1152 = vmax.f32 %v1068, 0.0
  %v1153 = vmax.f32 %v1073, 0.0
  %v1154 = vmax.f32 %v1076, 0.0
  %v1155 = vmax.f32 %v1081, 0.0
  %v1156 = vmax.f32 %v1084, 0.0
  %v1157 = vmax.f32 %v1089, 0.0
  %v1158 = vmax.f32 %v1092, 0.0
  %v1159 = vpack.c.bf16 %v1096, %v1095
  %v1160 = vpack.c.bf16 %v1098, %v1097
  %v1161 = vpack.c.bf16 %v1100, %v1099
  %v1162 = vpack.c.bf16 %v1102, %v1101
  %v1163 = vpack.c.bf16 %v1104, %v1103
  %v1164 = vpack.c.bf16 %v1106, %v1105
  %v1165 = vpack.c.bf16 %v1108, %v1107
  %v1166 = vpack.c.bf16 %v1110, %v1109
  %v1167 = vpack.c.bf16 %v1112, %v1111
  %v1168 = vpack.c.bf16 %v1114, %v1113
  %v1169 = vpack.c.bf16 %v1116, %v1115
  %v1170 = vpack.c.bf16 %v1118, %v1117
  %v1171 = vpack.c.bf16 %v1120, %v1119
  %v1172 = vpack.c.bf16 %v1122, %v1121
  %v1173 = vpack.c.bf16 %v1124, %v1123
  %v1174 = vpack.c.bf16 %v1126, %v1125
  %v1175 = vpack.c.bf16 %v1128, %v1127
  %v1176 = vpack.c.bf16 %v1130, %v1129
  %v1177 = vpack.c.bf16 %v1132, %v1131
  %v1178 = vpack.c.bf16 %v1134, %v1133
  %v1179 = vpack.c.bf16 %v1136, %v1135
  %v1180 = vpack.c.bf16 %v1138, %v1137
  %v1181 = vpack.c.bf16 %v1140, %v1139
  %v1182 = vpack.c.bf16 %v1142, %v1141
  %v1183 = vpack.c.bf16 %v1144, %v1143
  %v1184 = vpack.c.bf16 %v1146, %v1145
  %v1185 = vpack.c.bf16 %v1148, %v1147
  %v1186 = vpack.c.bf16 %v1150, %v1149
  %v1187 = vpack.c.bf16 %v1152, %v1151
  %v1188 = vpack.c.bf16 %v1154, %v1153
  %v1189 = vpack.c.bf16 %v1156, %v1155
  %v1190 = vpack.c.bf16 %v1158, %v1157
  %v1191 = vld [vmem:[%s4] sm:$0xf]
  %v1192 = vld [vmem:[%s4 + $0x4] sm:$0xf]
  %v1193 = vld [vmem:[%s4 + $0x8] sm:$0xf]
  %v1194 = vld [vmem:[%s4 + $0xc] sm:$0xf]
  %v1195 = vld [vmem:[%s4 + $0x10] sm:$0xf]
  %v1196 = vld [vmem:[%s4 + $0x14] sm:$0xf]
  %v1197 = vld [vmem:[%s4 + $0x18] sm:$0xf]
  %v1198 = vld [vmem:[%s4 + $0x1c] sm:$0xf]
  %v1199 = vld [vmem:[%s4 + $0x20] sm:$0xf]
  %v1200 = vld [vmem:[%s4 + $0x24] sm:$0xf]
  %v1201 = vld [vmem:[%s4 + $0x28] sm:$0xf]
  %v1202 = vld [vmem:[%s4 + $0x2c] sm:$0xf]
  %v1203 = vld [vmem:[%s4 + $0x30] sm:$0xf]
  %v1204 = vld [vmem:[%s4 + $0x34] sm:$0xf]
  %v1205 = vld [vmem:[%s4 + $0x38] sm:$0xf]
  %v1206 = vld [vmem:[%s4 + $0x3c] sm:$0xf]
  %v1207 = vld [vmem:[%s5] sm:$0x1]
  %v1209 = vlaneseq
  %v1210 = vshrl.u32 %v1209, 7
  %v1211 = vsub.s32 0, %v1210
  %v1212 = vrot.slane %v1207, %v1211
  %v1230 = vunpack.c.l.b16 %v1191
  %v1231 = vunpack.c.l.b16 %v1192
  %v1232 = vunpack.c.l.b16 %v1193
  %v1233 = vunpack.c.l.b16 %v1194
  %v1234 = vunpack.c.l.b16 %v1195
  %v1235 = vunpack.c.l.b16 %v1196
  %v1236 = vunpack.c.l.b16 %v1197
  %v1237 = vunpack.c.l.b16 %v1198
  %v1238 = vunpack.c.l.b16 %v1199
  %v1239 = vunpack.c.l.b16 %v1200
  %v1240 = vunpack.c.l.b16 %v1201
  %v1241 = vunpack.c.l.b16 %v1202
  %v1242 = vunpack.c.l.b16 %v1203
  %v1243 = vunpack.c.l.b16 %v1204
  %v1244 = vunpack.c.l.b16 %v1205
  %v1245 = vunpack.c.l.b16 %v1206
  %v1246 = vpack.c.b16 %v1231, %v1230
  %v1247 = vpack.c.b16 %v1233, %v1232
  %v1248 = vpack.c.b16 %v1235, %v1234
  %v1249 = vpack.c.b16 %v1237, %v1236
  %v1250 = vpack.c.b16 %v1239, %v1238
  %v1251 = vpack.c.b16 %v1241, %v1240
  %v1252 = vpack.c.b16 %v1243, %v1242
  %v1253 = vpack.c.b16 %v1245, %v1244
  %1262 = vmatprep.subr.bf16.mxu0 0
  %1263 = vmatpush1.bf16.msra.mxu0 %v1253
  %1264 = vmatprep.subr.bf16.mxu0 0
  %1265 = vmatpush1.bf16.msra.mxu0 %v1252
  %1266 = vmatprep.subr.bf16.mxu0 0
  %1267 = vmatpush1.bf16.msra.mxu0 %v1251
  %1268 = vmatprep.subr.bf16.mxu0 0
  %1269 = vmatpush1.bf16.msra.mxu0 %v1250
  %1270 = vmatprep.subr.bf16.mxu0 0
  %1271 = vmatpush1.bf16.msra.mxu0 %v1249
  %1272 = vmatprep.subr.bf16.mxu0 0
  %1273 = vmatpush1.bf16.msra.mxu0 %v1248
  %1274 = vmatprep.subr.bf16.mxu0 0
  %1275 = vmatpush1.bf16.msra.mxu0 %v1247
  %1276 = vmatprep.subr.bf16.mxu0 0
  %1277 = vmatpush1.bf16.msra.mxu0 %v1246
  %1278 = vmatprep.subr.bf16.mxu0 0
  %1279 = vmatpush2.bf16.msra.mxu0 0
  %1280 = vmatprep.subr.bf16.mxu0 0
  %1281 = vmatpush2.bf16.msra.mxu0 0
  %1282 = vmatprep.subr.bf16.mxu0 0
  %1283 = vmatpush2.bf16.msra.mxu0 0
  %1284 = vmatprep.subr.bf16.mxu0 0
  %1285 = vmatpush2.bf16.msra.mxu0 0
  %1286 = vmatprep.subr.bf16.mxu0 0
  %1287 = vmatpush2.bf16.msra.mxu0 0
  %1288 = vmatprep.subr.bf16.mxu0 0
  %1289 = vmatpush2.bf16.msra.mxu0 0
  %1290 = vmatprep.subr.bf16.mxu0 0
  %1291 = vmatpush2.bf16.msra.mxu0 0
  %1292 = vmatprep.subr.bf16.mxu0 0
  %1293 = vmatpush2.bf16.msra.mxu0 0
  %1294 = vmatprep.mubr.bf16.mxu0 0
  %1295 = vmatmul.mubr.bf16.gmra.mxu0 %v1159
  %v1296 = vpop.f32.mrf.mxu0
  %v1297 = vadd.f32 %v1212, %v1296
  %v1298 = vpop.f32.mrf.mxu0
  %v1299 = vpop.f32.mrf.mxu0
  %v1300 = vadd.f32 %v1212, %v1299
  %v1301 = vpop.f32.mrf.mxu0
  %1302 = vmatprep.mubr.bf16.mxu0 0
  %1303 = vmatmul.mubr.bf16.gmra.mxu0 %v1160
  %v1304 = vpop.f32.mrf.mxu0
  %v1305 = vadd.f32 %v1212, %v1304
  %v1306 = vpop.f32.mrf.mxu0
  %v1307 = vpop.f32.mrf.mxu0
  %v1308 = vadd.f32 %v1212, %v1307
  %v1309 = vpop.f32.mrf.mxu0
  %1310 = vmatprep.mubr.bf16.mxu0 0
  %1311 = vmatmul.mubr.bf16.gmra.mxu0 %v1161
  %v1312 = vpop.f32.mrf.mxu0
  %v1313 = vadd.f32 %v1212, %v1312
  %v1314 = vpop.f32.mrf.mxu0
  %v1315 = vpop.f32.mrf.mxu0
  %v1316 = vadd.f32 %v1212, %v1315
  %v1317 = vpop.f32.mrf.mxu0
  %1318 = vmatprep.mubr.bf16.mxu0 0
  %1319 = vmatmul.mubr.bf16.gmra.mxu0 %v1162
  %v1320 = vpop.f32.mrf.mxu0
  %v1321 = vadd.f32 %v1212, %v1320
  %v1322 = vpop.f32.mrf.mxu0
  %v1323 = vpop.f32.mrf.mxu0
  %v1324 = vadd.f32 %v1212, %v1323
  %v1325 = vpop.f32.mrf.mxu0
  %1326 = vmatprep.mubr.bf16.mxu0 0
  %1327 = vmatmul.mubr.bf16.gmra.mxu0 %v1163
  %v1328 = vpop.f32.mrf.mxu0
  %v1329 = vadd.f32 %v1212, %v1328
  %v1330 = vpop.f32.mrf.mxu0
  %v1331 = vpop.f32.mrf.mxu0
  %v1332 = vadd.f32 %v1212, %v1331
  %v1333 = vpop.f32.mrf.mxu0
  %1334 = vmatprep.mubr.bf16.mxu0 0
  %1335 = vmatmul.mubr.bf16.gmra.mxu0 %v1164
  %v1336 = vpop.f32.mrf.mxu0
  %v1337 = vadd.f32 %v1212, %v1336
  %v1338 = vpop.f32.mrf.mxu0
  %v1339 = vpop.f32.mrf.mxu0
  %v1340 = vadd.f32 %v1212, %v1339
  %v1341 = vpop.f32.mrf.mxu0
  %1342 = vmatprep.mubr.bf16.mxu0 0
  %1343 = vmatmul.mubr.bf16.gmra.mxu0 %v1165
  %v1344 = vpop.f32.mrf.mxu0
  %v1345 = vadd.f32 %v1212, %v1344
  %v1346 = vpop.f32.mrf.mxu0
  %v1347 = vpop.f32.mrf.mxu0
  %v1348 = vadd.f32 %v1212, %v1347
  %v1349 = vpop.f32.mrf.mxu0
  %1350 = vmatprep.mubr.bf16.mxu0 0
  %1351 = vmatmul.mubr.bf16.gmra.mxu0 %v1166
  %v1352 = vpop.f32.mrf.mxu0
  %v1353 = vadd.f32 %v1212, %v1352
  %v1354 = vpop.f32.mrf.mxu0
  %v1355 = vpop.f32.mrf.mxu0
  %v1356 = vadd.f32 %v1212, %v1355
  %v1357 = vpop.f32.mrf.mxu0
  %1358 = vmatprep.mubr.bf16.mxu0 0
  %1359 = vmatmul.mubr.bf16.gmra.mxu0 %v1167
  %v1360 = vpop.f32.mrf.mxu0
  %v1361 = vadd.f32 %v1212, %v1360
  %v1362 = vpop.f32.mrf.mxu0
  %v1363 = vpop.f32.mrf.mxu0
  %v1364 = vadd.f32 %v1212, %v1363
  %v1365 = vpop.f32.mrf.mxu0
  %1366 = vmatprep.mubr.bf16.mxu0 0
  %1367 = vmatmul.mubr.bf16.gmra.mxu0 %v1168
  %v1368 = vpop.f32.mrf.mxu0
  %v1369 = vadd.f32 %v1212, %v1368
  %v1370 = vpop.f32.mrf.mxu0
  %v1371 = vpop.f32.mrf.mxu0
  %v1372 = vadd.f32 %v1212, %v1371
  %v1373 = vpop.f32.mrf.mxu0
  %1374 = vmatprep.mubr.bf16.mxu0 0
  %1375 = vmatmul.mubr.bf16.gmra.mxu0 %v1169
  %v1376 = vpop.f32.mrf.mxu0
  %v1377 = vadd.f32 %v1212, %v1376
  %v1378 = vpop.f32.mrf.mxu0
  %v1379 = vpop.f32.mrf.mxu0
  %v1380 = vadd.f32 %v1212, %v1379
  %v1381 = vpop.f32.mrf.mxu0
  %1382 = vmatprep.mubr.bf16.mxu0 0
  %1383 = vmatmul.mubr.bf16.gmra.mxu0 %v1170
  %v1384 = vpop.f32.mrf.mxu0
  %v1385 = vadd.f32 %v1212, %v1384
  %v1386 = vpop.f32.mrf.mxu0
  %v1387 = vpop.f32.mrf.mxu0
  %v1388 = vadd.f32 %v1212, %v1387
  %v1389 = vpop.f32.mrf.mxu0
  %1390 = vmatprep.mubr.bf16.mxu0 0
  %1391 = vmatmul.mubr.bf16.gmra.mxu0 %v1171
  %v1392 = vpop.f32.mrf.mxu0
  %v1393 = vadd.f32 %v1212, %v1392
  %v1394 = vpop.f32.mrf.mxu0
  %v1395 = vpop.f32.mrf.mxu0
  %v1396 = vadd.f32 %v1212, %v1395
  %v1397 = vpop.f32.mrf.mxu0
  %1398 = vmatprep.mubr.bf16.mxu0 0
  %1399 = vmatmul.mubr.bf16.gmra.mxu0 %v1172
  %v1400 = vpop.f32.mrf.mxu0
  %v1401 = vadd.f32 %v1212, %v1400
  %v1402 = vpop.f32.mrf.mxu0
  %v1403 = vpop.f32.mrf.mxu0
  %v1404 = vadd.f32 %v1212, %v1403
  %v1405 = vpop.f32.mrf.mxu0
  %1406 = vmatprep.mubr.bf16.mxu0 0
  %1407 = vmatmul.mubr.bf16.gmra.mxu0 %v1173
  %v1408 = vpop.f32.mrf.mxu0
  %v1409 = vadd.f32 %v1212, %v1408
  %v1410 = vpop.f32.mrf.mxu0
  %v1411 = vpop.f32.mrf.mxu0
  %v1412 = vadd.f32 %v1212, %v1411
  %v1413 = vpop.f32.mrf.mxu0
  %1414 = vmatprep.mubr.bf16.mxu0 0
  %1415 = vmatmul.mubr.bf16.gmra.mxu0 %v1174
  %v1416 = vpop.f32.mrf.mxu0
  %v1417 = vadd.f32 %v1212, %v1416
  %v1418 = vpop.f32.mrf.mxu0
  %v1419 = vpop.f32.mrf.mxu0
  %v1420 = vadd.f32 %v1212, %v1419
  %v1421 = vpop.f32.mrf.mxu0
  %1422 = vmatprep.mubr.bf16.mxu0 0
  %1423 = vmatmul.mubr.bf16.gmra.mxu0 %v1175
  %v1424 = vpop.f32.mrf.mxu0
  %v1425 = vadd.f32 %v1212, %v1424
  %v1426 = vpop.f32.mrf.mxu0
  %v1427 = vpop.f32.mrf.mxu0
  %v1428 = vadd.f32 %v1212, %v1427
  %v1429 = vpop.f32.mrf.mxu0
  %1430 = vmatprep.mubr.bf16.mxu0 0
  %1431 = vmatmul.mubr.bf16.gmra.mxu0 %v1176
  %v1432 = vpop.f32.mrf.mxu0
  %v1433 = vadd.f32 %v1212, %v1432
  %v1434 = vpop.f32.mrf.mxu0
  %v1435 = vpop.f32.mrf.mxu0
  %v1436 = vadd.f32 %v1212, %v1435
  %v1437 = vpop.f32.mrf.mxu0
  %1438 = vmatprep.mubr.bf16.mxu0 0
  %1439 = vmatmul.mubr.bf16.gmra.mxu0 %v1177
  %v1440 = vpop.f32.mrf.mxu0
  %v1441 = vadd.f32 %v1212, %v1440
  %v1442 = vpop.f32.mrf.mxu0
  %v1443 = vpop.f32.mrf.mxu0
  %v1444 = vadd.f32 %v1212, %v1443
  %v1445 = vpop.f32.mrf.mxu0
  %1446 = vmatprep.mubr.bf16.mxu0 0
  %1447 = vmatmul.mubr.bf16.gmra.mxu0 %v1178
  %v1448 = vpop.f32.mrf.mxu0
  %v1449 = vadd.f32 %v1212, %v1448
  %v1450 = vpop.f32.mrf.mxu0
  %v1451 = vpop.f32.mrf.mxu0
  %v1452 = vadd.f32 %v1212, %v1451
  %v1453 = vpop.f32.mrf.mxu0
  %1454 = vmatprep.mubr.bf16.mxu0 0
  %1455 = vmatmul.mubr.bf16.gmra.mxu0 %v1179
  %v1456 = vpop.f32.mrf.mxu0
  %v1457 = vadd.f32 %v1212, %v1456
  %v1458 = vpop.f32.mrf.mxu0
  %v1459 = vpop.f32.mrf.mxu0
  %v1460 = vadd.f32 %v1212, %v1459
  %v1461 = vpop.f32.mrf.mxu0
  %1462 = vmatprep.mubr.bf16.mxu0 0
  %1463 = vmatmul.mubr.bf16.gmra.mxu0 %v1180
  %v1464 = vpop.f32.mrf.mxu0
  %v1465 = vadd.f32 %v1212, %v1464
  %v1466 = vpop.f32.mrf.mxu0
  %v1467 = vpop.f32.mrf.mxu0
  %v1468 = vadd.f32 %v1212, %v1467
  %v1469 = vpop.f32.mrf.mxu0
  %1470 = vmatprep.mubr.bf16.mxu0 0
  %1471 = vmatmul.mubr.bf16.gmra.mxu0 %v1181
  %v1472 = vpop.f32.mrf.mxu0
  %v1473 = vadd.f32 %v1212, %v1472
  %v1474 = vpop.f32.mrf.mxu0
  %v1475 = vpop.f32.mrf.mxu0
  %v1476 = vadd.f32 %v1212, %v1475
  %v1477 = vpop.f32.mrf.mxu0
  %1478 = vmatprep.mubr.bf16.mxu0 0
  %1479 = vmatmul.mubr.bf16.gmra.mxu0 %v1182
  %v1480 = vpop.f32.mrf.mxu0
  %v1481 = vadd.f32 %v1212, %v1480
  %v1482 = vpop.f32.mrf.mxu0
  %v1483 = vpop.f32.mrf.mxu0
  %v1484 = vadd.f32 %v1212, %v1483
  %v1485 = vpop.f32.mrf.mxu0
  %1486 = vmatprep.mubr.bf16.mxu0 0
  %1487 = vmatmul.mubr.bf16.gmra.mxu0 %v1183
  %v1488 = vpop.f32.mrf.mxu0
  %v1489 = vadd.f32 %v1212, %v1488
  %v1490 = vpop.f32.mrf.mxu0
  %v1491 = vpop.f32.mrf.mxu0
  %v1492 = vadd.f32 %v1212, %v1491
  %v1493 = vpop.f32.mrf.mxu0
  %1494 = vmatprep.mubr.bf16.mxu0 0
  %1495 = vmatmul.mubr.bf16.gmra.mxu0 %v1184
  %v1496 = vpop.f32.mrf.mxu0
  %v1497 = vadd.f32 %v1212, %v1496
  %v1498 = vpop.f32.mrf.mxu0
  %v1499 = vpop.f32.mrf.mxu0
  %v1500 = vadd.f32 %v1212, %v1499
  %v1501 = vpop.f32.mrf.mxu0
  %1502 = vmatprep.mubr.bf16.mxu0 0
  %1503 = vmatmul.mubr.bf16.gmra.mxu0 %v1185
  %v1504 = vpop.f32.mrf.mxu0
  %v1505 = vadd.f32 %v1212, %v1504
  %v1506 = vpop.f32.mrf.mxu0
  %v1507 = vpop.f32.mrf.mxu0
  %v1508 = vadd.f32 %v1212, %v1507
  %v1509 = vpop.f32.mrf.mxu0
  %1510 = vmatprep.mubr.bf16.mxu0 0
  %1511 = vmatmul.mubr.bf16.gmra.mxu0 %v1186
  %v1512 = vpop.f32.mrf.mxu0
  %v1513 = vadd.f32 %v1212, %v1512
  %v1514 = vpop.f32.mrf.mxu0
  %v1515 = vpop.f32.mrf.mxu0
  %v1516 = vadd.f32 %v1212, %v1515
  %v1517 = vpop.f32.mrf.mxu0
  %1518 = vmatprep.mubr.bf16.mxu0 0
  %1519 = vmatmul.mubr.bf16.gmra.mxu0 %v1187
  %v1520 = vpop.f32.mrf.mxu0
  %v1521 = vadd.f32 %v1212, %v1520
  %v1522 = vpop.f32.mrf.mxu0
  %v1523 = vpop.f32.mrf.mxu0
  %v1524 = vadd.f32 %v1212, %v1523
  %v1525 = vpop.f32.mrf.mxu0
  %1526 = vmatprep.mubr.bf16.mxu0 0
  %1527 = vmatmul.mubr.bf16.gmra.mxu0 %v1188
  %v1528 = vpop.f32.mrf.mxu0
  %v1529 = vadd.f32 %v1212, %v1528
  %v1530 = vpop.f32.mrf.mxu0
  %v1531 = vpop.f32.mrf.mxu0
  %v1532 = vadd.f32 %v1212, %v1531
  %v1533 = vpop.f32.mrf.mxu0
  %1534 = vmatprep.mubr.bf16.mxu0 0
  %1535 = vmatmul.mubr.bf16.gmra.mxu0 %v1189
  %v1536 = vpop.f32.mrf.mxu0
  %v1537 = vadd.f32 %v1212, %v1536
  %v1538 = vpop.f32.mrf.mxu0
  %v1539 = vpop.f32.mrf.mxu0
  %v1540 = vadd.f32 %v1212, %v1539
  %v1541 = vpop.f32.mrf.mxu0
  %1542 = vmatprep.mubr.bf16.mxu0 0
  %1543 = vmatmul.mubr.bf16.gmra.mxu0 %v1190
  %v1544 = vpop.f32.mrf.mxu0
  %v1545 = vadd.f32 %v1212, %v1544
  %v1546 = vpop.f32.mrf.mxu0
  %v1547 = vpop.f32.mrf.mxu0
  %v1548 = vadd.f32 %v1212, %v1547
  %v1549 = vpop.f32.mrf.mxu0
  %1550 = vdwg.mxu0
  %v1551 = vsub.f32 0.0, %v1297
  %v1552 = vsub.f32 0.0, %v1300
  %v1553 = vsub.f32 0.0, %v1305
  %v1554 = vsub.f32 0.0, %v1308
  %v1555 = vsub.f32 0.0, %v1313
  %v1556 = vsub.f32 0.0, %v1316
  %v1557 = vsub.f32 0.0, %v1321
  %v1558 = vsub.f32 0.0, %v1324
  %v1559 = vsub.f32 0.0, %v1329
  %v1560 = vsub.f32 0.0, %v1332
  %v1561 = vsub.f32 0.0, %v1337
  %v1562 = vsub.f32 0.0, %v1340
  %v1563 = vsub.f32 0.0, %v1345
  %v1564 = vsub.f32 0.0, %v1348
  %v1565 = vsub.f32 0.0, %v1353
  %v1566 = vsub.f32 0.0, %v1356
  %v1567 = vsub.f32 0.0, %v1361
  %v1568 = vsub.f32 0.0, %v1364
  %v1569 = vsub.f32 0.0, %v1369
  %v1570 = vsub.f32 0.0, %v1372
  %v1571 = vsub.f32 0.0, %v1377
  %v1572 = vsub.f32 0.0, %v1380
  %v1573 = vsub.f32 0.0, %v1385
  %v1574 = vsub.f32 0.0, %v1388
  %v1575 = vsub.f32 0.0, %v1393
  %v1576 = vsub.f32 0.0, %v1396
  %v1577 = vsub.f32 0.0, %v1401
  %v1578 = vsub.f32 0.0, %v1404
  %v1579 = vsub.f32 0.0, %v1409
  %v1580 = vsub.f32 0.0, %v1412
  %v1581 = vsub.f32 0.0, %v1417
  %v1582 = vsub.f32 0.0, %v1420
  %v1583 = vsub.f32 0.0, %v1425
  %v1584 = vsub.f32 0.0, %v1428
  %v1585 = vsub.f32 0.0, %v1433
  %v1586 = vsub.f32 0.0, %v1436
  %v1587 = vsub.f32 0.0, %v1441
  %v1588 = vsub.f32 0.0, %v1444
  %v1589 = vsub.f32 0.0, %v1449
  %v1590 = vsub.f32 0.0, %v1452
  %v1591 = vsub.f32 0.0, %v1457
  %v1592 = vsub.f32 0.0, %v1460
  %v1593 = vsub.f32 0.0, %v1465
  %v1594 = vsub.f32 0.0, %v1468
  %v1595 = vsub.f32 0.0, %v1473
  %v1596 = vsub.f32 0.0, %v1476
  %v1597 = vsub.f32 0.0, %v1481
  %v1598 = vsub.f32 0.0, %v1484
  %v1599 = vsub.f32 0.0, %v1489
  %v1600 = vsub.f32 0.0, %v1492
  %v1601 = vsub.f32 0.0, %v1497
  %v1602 = vsub.f32 0.0, %v1500
  %v1603 = vsub.f32 0.0, %v1505
  %v1604 = vsub.f32 0.0, %v1508
  %v1605 = vsub.f32 0.0, %v1513
  %v1606 = vsub.f32 0.0, %v1516
  %v1607 = vsub.f32 0.0, %v1521
  %v1608 = vsub.f32 0.0, %v1524
  %v1609 = vsub.f32 0.0, %v1529
  %v1610 = vsub.f32 0.0, %v1532
  %v1611 = vsub.f32 0.0, %v1537
  %v1612 = vsub.f32 0.0, %v1540
  %v1613 = vsub.f32 0.0, %v1545
  %v1614 = vsub.f32 0.0, %v1548
  %v1615 = vmul.f32 %v1551, 1.442695
  %v1616 = vpow.pop %v1615
  %v1617 = vmul.f32 %v1552, 1.442695
  %v1618 = vpow.pop %v1617
  %v1619 = vmul.f32 %v1553, 1.442695
  %v1620 = vpow.pop %v1619
  %v1621 = vmul.f32 %v1554, 1.442695
  %v1622 = vpow.pop %v1621
  %v1623 = vmul.f32 %v1555, 1.442695
  %v1624 = vpow.pop %v1623
  %v1625 = vmul.f32 %v1556, 1.442695
  %v1626 = vpow.pop %v1625
  %v1627 = vmul.f32 %v1557, 1.442695
  %v1628 = vpow.pop %v1627
  %v1629 = vmul.f32 %v1558, 1.442695
  %v1630 = vpow.pop %v1629
  %v1631 = vmul.f32 %v1559, 1.442695
  %v1632 = vpow.pop %v1631
  %v1633 = vmul.f32 %v1560, 1.442695
  %v1634 = vpow.pop %v1633
  %v1635 = vmul.f32 %v1561, 1.442695
  %v1636 = vpow.pop %v1635
  %v1637 = vmul.f32 %v1562, 1.442695
  %v1638 = vpow.pop %v1637
  %v1639 = vmul.f32 %v1563, 1.442695
  %v1640 = vpow.pop %v1639
  %v1641 = vmul.f32 %v1564, 1.442695
  %v1642 = vpow.pop %v1641
  %v1643 = vmul.f32 %v1565, 1.442695
  %v1644 = vpow.pop %v1643
  %v1645 = vmul.f32 %v1566, 1.442695
  %v1646 = vpow.pop %v1645
  %v1647 = vmul.f32 %v1567, 1.442695
  %v1648 = vpow.pop %v1647
  %v1649 = vmul.f32 %v1568, 1.442695
  %v1650 = vpow.pop %v1649
  %v1651 = vmul.f32 %v1569, 1.442695
  %v1652 = vpow.pop %v1651
  %v1653 = vmul.f32 %v1570, 1.442695
  %v1654 = vpow.pop %v1653
  %v1655 = vmul.f32 %v1571, 1.442695
  %v1656 = vpow.pop %v1655
  %v1657 = vmul.f32 %v1572, 1.442695
  %v1658 = vpow.pop %v1657
  %v1659 = vmul.f32 %v1573, 1.442695
  %v1660 = vpow.pop %v1659
  %v1661 = vmul.f32 %v1574, 1.442695
  %v1662 = vpow.pop %v1661
  %v1663 = vmul.f32 %v1575, 1.442695
  %v1664 = vpow.pop %v1663
  %v1665 = vmul.f32 %v1576, 1.442695
  %v1666 = vpow.pop %v1665
  %v1667 = vmul.f32 %v1577, 1.442695
  %v1668 = vpow.pop %v1667
  %v1669 = vmul.f32 %v1578, 1.442695
  %v1670 = vpow.pop %v1669
  %v1671 = vmul.f32 %v1579, 1.442695
  %v1672 = vpow.pop %v1671
  %v1673 = vmul.f32 %v1580, 1.442695
  %v1674 = vpow.pop %v1673
  %v1675 = vmul.f32 %v1581, 1.442695
  %v1676 = vpow.pop %v1675
  %v1677 = vmul.f32 %v1582, 1.442695
  %v1678 = vpow.pop %v1677
  %v1679 = vmul.f32 %v1583, 1.442695
  %v1680 = vpow.pop %v1679
  %v1681 = vmul.f32 %v1584, 1.442695
  %v1682 = vpow.pop %v1681
  %v1683 = vmul.f32 %v1585, 1.442695
  %v1684 = vpow.pop %v1683
  %v1685 = vmul.f32 %v1586, 1.442695
  %v1686 = vpow.pop %v1685
  %v1687 = vmul.f32 %v1587, 1.442695
  %v1688 = vpow.pop %v1687
  %v1689 = vmul.f32 %v1588, 1.442695
  %v1690 = vpow.pop %v1689
  %v1691 = vmul.f32 %v1589, 1.442695
  %v1692 = vpow.pop %v1691
  %v1693 = vmul.f32 %v1590, 1.442695
  %v1694 = vpow.pop %v1693
  %v1695 = vmul.f32 %v1591, 1.442695
  %v1696 = vpow.pop %v1695
  %v1697 = vmul.f32 %v1592, 1.442695
  %v1698 = vpow.pop %v1697
  %v1699 = vmul.f32 %v1593, 1.442695
  %v1700 = vpow.pop %v1699
  %v1701 = vmul.f32 %v1594, 1.442695
  %v1702 = vpow.pop %v1701
  %v1703 = vmul.f32 %v1595, 1.442695
  %v1704 = vpow.pop %v1703
  %v1705 = vmul.f32 %v1596, 1.442695
  %v1706 = vpow.pop %v1705
  %v1707 = vmul.f32 %v1597, 1.442695
  %v1708 = vpow.pop %v1707
  %v1709 = vmul.f32 %v1598, 1.442695
  %v1710 = vpow.pop %v1709
  %v1711 = vmul.f32 %v1599, 1.442695
  %v1712 = vpow.pop %v1711
  %v1713 = vmul.f32 %v1600, 1.442695
  %v1714 = vpow.pop %v1713
  %v1715 = vmul.f32 %v1601, 1.442695
  %v1716 = vpow.pop %v1715
  %v1717 = vmul.f32 %v1602, 1.442695
  %v1718 = vpow.pop %v1717
  %v1719 = vmul.f32 %v1603, 1.442695
  %v1720 = vpow.pop %v1719
  %v1721 = vmul.f32 %v1604, 1.442695
  %v1722 = vpow.pop %v1721
  %v1723 = vmul.f32 %v1605, 1.442695
  %v1724 = vpow.pop %v1723
  %v1725 = vmul.f32 %v1606, 1.442695
  %v1726 = vpow.pop %v1725
  %v1727 = vmul.f32 %v1607, 1.442695
  %v1728 = vpow.pop %v1727
  %v1729 = vmul.f32 %v1608, 1.442695
  %v1730 = vpow.pop %v1729
  %v1731 = vmul.f32 %v1609, 1.442695
  %v1732 = vpow.pop %v1731
  %v1733 = vmul.f32 %v1610, 1.442695
  %v1734 = vpow.pop %v1733
  %v1735 = vmul.f32 %v1611, 1.442695
  %v1736 = vpow.pop %v1735
  %v1737 = vmul.f32 %v1612, 1.442695
  %v1738 = vpow.pop %v1737
  %v1739 = vmul.f32 %v1613, 1.442695
  %v1740 = vpow.pop %v1739
  %v1741 = vmul.f32 %v1614, 1.442695
  %v1742 = vpow.pop %v1741
  %v1743 = vadd.f32 %v1616, 1.0
  %v1744 = vadd.f32 %v1618, 1.0
  %v1745 = vadd.f32 %v1620, 1.0
  %v1746 = vadd.f32 %v1622, 1.0
  %v1747 = vadd.f32 %v1624, 1.0
  %v1748 = vadd.f32 %v1626, 1.0
  %v1749 = vadd.f32 %v1628, 1.0
  %v1750 = vadd.f32 %v1630, 1.0
  %v1751 = vadd.f32 %v1632, 1.0
  %v1752 = vadd.f32 %v1634, 1.0
  %v1753 = vadd.f32 %v1636, 1.0
  %v1754 = vadd.f32 %v1638, 1.0
  %v1755 = vadd.f32 %v1640, 1.0
  %v1756 = vadd.f32 %v1642, 1.0
  %v1757 = vadd.f32 %v1644, 1.0
  %v1758 = vadd.f32 %v1646, 1.0
  %v1759 = vadd.f32 %v1648, 1.0
  %v1760 = vadd.f32 %v1650, 1.0
  %v1761 = vadd.f32 %v1652, 1.0
  %v1762 = vadd.f32 %v1654, 1.0
  %v1763 = vadd.f32 %v1656, 1.0
  %v1764 = vadd.f32 %v1658, 1.0
  %v1765 = vadd.f32 %v1660, 1.0
  %v1766 = vadd.f32 %v1662, 1.0
  %v1767 = vadd.f32 %v1664, 1.0
  %v1768 = vadd.f32 %v1666, 1.0
  %v1769 = vadd.f32 %v1668, 1.0
  %v1770 = vadd.f32 %v1670, 1.0
  %v1771 = vadd.f32 %v1672, 1.0
  %v1772 = vadd.f32 %v1674, 1.0
  %v1773 = vadd.f32 %v1676, 1.0
  %v1774 = vadd.f32 %v1678, 1.0
  %v1775 = vadd.f32 %v1680, 1.0
  %v1776 = vadd.f32 %v1682, 1.0
  %v1777 = vadd.f32 %v1684, 1.0
  %v1778 = vadd.f32 %v1686, 1.0
  %v1779 = vadd.f32 %v1688, 1.0
  %v1780 = vadd.f32 %v1690, 1.0
  %v1781 = vadd.f32 %v1692, 1.0
  %v1782 = vadd.f32 %v1694, 1.0
  %v1783 = vadd.f32 %v1696, 1.0
  %v1784 = vadd.f32 %v1698, 1.0
  %v1785 = vadd.f32 %v1700, 1.0
  %v1786 = vadd.f32 %v1702, 1.0
  %v1787 = vadd.f32 %v1704, 1.0
  %v1788 = vadd.f32 %v1706, 1.0
  %v1789 = vadd.f32 %v1708, 1.0
  %v1790 = vadd.f32 %v1710, 1.0
  %v1791 = vadd.f32 %v1712, 1.0
  %v1792 = vadd.f32 %v1714, 1.0
  %v1793 = vadd.f32 %v1716, 1.0
  %v1794 = vadd.f32 %v1718, 1.0
  %v1795 = vadd.f32 %v1720, 1.0
  %v1796 = vadd.f32 %v1722, 1.0
  %v1797 = vadd.f32 %v1724, 1.0
  %v1798 = vadd.f32 %v1726, 1.0
  %v1799 = vadd.f32 %v1728, 1.0
  %v1800 = vadd.f32 %v1730, 1.0
  %v1801 = vadd.f32 %v1732, 1.0
  %v1802 = vadd.f32 %v1734, 1.0
  %v1803 = vadd.f32 %v1736, 1.0
  %v1804 = vadd.f32 %v1738, 1.0
  %v1805 = vadd.f32 %v1740, 1.0
  %v1806 = vadd.f32 %v1742, 1.0
  %v1807 = vrcp.pop %v1743
  %v1808 = vrcp.pop %v1744
  %v1809 = vrcp.pop %v1745
  %v1810 = vrcp.pop %v1746
  %v1811 = vrcp.pop %v1747
  %v1812 = vrcp.pop %v1748
  %v1813 = vrcp.pop %v1749
  %v1814 = vrcp.pop %v1750
  %v1815 = vrcp.pop %v1751
  %v1816 = vrcp.pop %v1752
  %v1817 = vrcp.pop %v1753
  %v1818 = vrcp.pop %v1754
  %v1819 = vrcp.pop %v1755
  %v1820 = vrcp.pop %v1756
  %v1821 = vrcp.pop %v1757
  %v1822 = vrcp.pop %v1758
  %v1823 = vrcp.pop %v1759
  %v1824 = vrcp.pop %v1760
  %v1825 = vrcp.pop %v1761
  %v1826 = vrcp.pop %v1762
  %v1827 = vrcp.pop %v1763
  %v1828 = vrcp.pop %v1764
  %v1829 = vrcp.pop %v1765
  %v1830 = vrcp.pop %v1766
  %v1831 = vrcp.pop %v1767
  %v1832 = vrcp.pop %v1768
  %v1833 = vrcp.pop %v1769
  %v1834 = vrcp.pop %v1770
  %v1835 = vrcp.pop %v1771
  %v1836 = vrcp.pop %v1772
  %v1837 = vrcp.pop %v1773
  %v1838 = vrcp.pop %v1774
  %v1839 = vrcp.pop %v1775
  %v1840 = vrcp.pop %v1776
  %v1841 = vrcp.pop %v1777
  %v1842 = vrcp.pop %v1778
  %v1843 = vrcp.pop %v1779
  %v1844 = vrcp.pop %v1780
  %v1845 = vrcp.pop %v1781
  %v1846 = vrcp.pop %v1782
  %v1847 = vrcp.pop %v1783
  %v1848 = vrcp.pop %v1784
  %v1849 = vrcp.pop %v1785
  %v1850 = vrcp.pop %v1786
  %v1851 = vrcp.pop %v1787
  %v1852 = vrcp.pop %v1788
  %v1853 = vrcp.pop %v1789
  %v1854 = vrcp.pop %v1790
  %v1855 = vrcp.pop %v1791
  %v1856 = vrcp.pop %v1792
  %v1857 = vrcp.pop %v1793
  %v1858 = vrcp.pop %v1794
  %v1859 = vrcp.pop %v1795
  %v1860 = vrcp.pop %v1796
  %v1861 = vrcp.pop %v1797
  %v1862 = vrcp.pop %v1798
  %v1863 = vrcp.pop %v1799
  %v1864 = vrcp.pop %v1800
  %v1865 = vrcp.pop %v1801
  %v1866 = vrcp.pop %v1802
  %v1867 = vrcp.pop %v1803
  %v1868 = vrcp.pop %v1804
  %v1869 = vrcp.pop %v1805
  %v1870 = vrcp.pop %v1806
  %v1871 = vpack.c.bf16 %v1808, %v1807
  %v1872 = vpack.c.bf16 %v1810, %v1809
  %v1873 = vpack.c.bf16 %v1812, %v1811
  %v1874 = vpack.c.bf16 %v1814, %v1813
  %v1875 = vpack.c.bf16 %v1816, %v1815
  %v1876 = vpack.c.bf16 %v1818, %v1817
  %v1877 = vpack.c.bf16 %v1820, %v1819
  %v1878 = vpack.c.bf16 %v1822, %v1821
  %v1879 = vpack.c.bf16 %v1824, %v1823
  %v1880 = vpack.c.bf16 %v1826, %v1825
  %v1881 = vpack.c.bf16 %v1828, %v1827
  %v1882 = vpack.c.bf16 %v1830, %v1829
  %v1883 = vpack.c.bf16 %v1832, %v1831
  %v1884 = vpack.c.bf16 %v1834, %v1833
  %v1885 = vpack.c.bf16 %v1836, %v1835
  %v1886 = vpack.c.bf16 %v1838, %v1837
  %v1887 = vpack.c.bf16 %v1840, %v1839
  %v1888 = vpack.c.bf16 %v1842, %v1841
  %v1889 = vpack.c.bf16 %v1844, %v1843
  %v1890 = vpack.c.bf16 %v1846, %v1845
  %v1891 = vpack.c.bf16 %v1848, %v1847
  %v1892 = vpack.c.bf16 %v1850, %v1849
  %v1893 = vpack.c.bf16 %v1852, %v1851
  %v1894 = vpack.c.bf16 %v1854, %v1853
  %v1895 = vpack.c.bf16 %v1856, %v1855
  %v1896 = vpack.c.bf16 %v1858, %v1857
  %v1897 = vpack.c.bf16 %v1860, %v1859
  %v1898 = vpack.c.bf16 %v1862, %v1861
  %v1899 = vpack.c.bf16 %v1864, %v1863
  %v1900 = vpack.c.bf16 %v1866, %v1865
  %v1901 = vpack.c.bf16 %v1868, %v1867
  %v1902 = vpack.c.bf16 %v1870, %v1869
  %v1935 = vunpack.c.l.b16 %v1871
  %v1936 = vunpack.c.h.b16 %v1871
  %v1937 = vunpack.c.l.b16 %v1872
  %v1938 = vunpack.c.h.b16 %v1872
  %v1939 = vunpack.c.l.b16 %v1873
  %v1940 = vunpack.c.h.b16 %v1873
  %v1941 = vunpack.c.l.b16 %v1874
  %v1942 = vunpack.c.h.b16 %v1874
  %v1943 = vunpack.c.l.b16 %v1875
  %v1944 = vunpack.c.h.b16 %v1875
  %v1945 = vunpack.c.l.b16 %v1876
  %v1946 = vunpack.c.h.b16 %v1876
  %v1947 = vunpack.c.l.b16 %v1877
  %v1948 = vunpack.c.h.b16 %v1877
  %v1949 = vunpack.c.l.b16 %v1878
  %v1950 = vunpack.c.h.b16 %v1878
  %v1951 = vunpack.c.l.b16 %v1879
  %v1952 = vunpack.c.h.b16 %v1879
  %v1953 = vunpack.c.l.b16 %v1880
  %v1954 = vunpack.c.h.b16 %v1880
  %v1955 = vunpack.c.l.b16 %v1881
  %v1956 = vunpack.c.h.b16 %v1881
  %v1957 = vunpack.c.l.b16 %v1882
  %v1958 = vunpack.c.h.b16 %v1882
  %v1959 = vunpack.c.l.b16 %v1883
  %v1960 = vunpack.c.h.b16 %v1883
  %v1961 = vunpack.c.l.b16 %v1884
  %v1962 = vunpack.c.h.b16 %v1884
  %v1963 = vunpack.c.l.b16 %v1885
  %v1964 = vunpack.c.h.b16 %v1885
  %v1965 = vunpack.c.l.b16 %v1886
  %v1966 = vunpack.c.h.b16 %v1886
  %v1967 = vunpack.c.l.b16 %v1887
  %v1968 = vunpack.c.h.b16 %v1887
  %v1969 = vunpack.c.l.b16 %v1888
  %v1970 = vunpack.c.h.b16 %v1888
  %v1971 = vunpack.c.l.b16 %v1889
  %v1972 = vunpack.c.h.b16 %v1889
  %v1973 = vunpack.c.l.b16 %v1890
  %v1974 = vunpack.c.h.b16 %v1890
  %v1975 = vunpack.c.l.b16 %v1891
  %v1976 = vunpack.c.h.b16 %v1891
  %v1977 = vunpack.c.l.b16 %v1892
  %v1978 = vunpack.c.h.b16 %v1892
  %v1979 = vunpack.c.l.b16 %v1893
  %v1980 = vunpack.c.h.b16 %v1893
  %v1981 = vunpack.c.l.b16 %v1894
  %v1982 = vunpack.c.h.b16 %v1894
  %v1983 = vunpack.c.l.b16 %v1895
  %v1984 = vunpack.c.h.b16 %v1895
  %v1985 = vunpack.c.l.b16 %v1896
  %v1986 = vunpack.c.h.b16 %v1896
  %v1987 = vunpack.c.l.b16 %v1897
  %v1988 = vunpack.c.h.b16 %v1897
  %v1989 = vunpack.c.l.b16 %v1898
  %v1990 = vunpack.c.h.b16 %v1898
  %v1991 = vunpack.c.l.b16 %v1899
  %v1992 = vunpack.c.h.b16 %v1899
  %v1993 = vunpack.c.l.b16 %v1900
  %v1994 = vunpack.c.h.b16 %v1900
  %v1995 = vunpack.c.l.b16 %v1901
  %v1996 = vunpack.c.h.b16 %v1901
  %v1997 = vunpack.c.l.b16 %v1902
  %v1998 = vunpack.c.h.b16 %v1902
  %v1999 = vpack.c.b16 %v1935, %v1935
  %v2000 = vpack.c.b16 %v1936, %v1936
  %v2001 = vpack.c.b16 %v1937, %v1937
  %v2002 = vpack.c.b16 %v1938, %v1938
  %v2003 = vpack.c.b16 %v1939, %v1939
  %v2004 = vpack.c.b16 %v1940, %v1940
  %v2005 = vpack.c.b16 %v1941, %v1941
  %v2006 = vpack.c.b16 %v1942, %v1942
  %v2007 = vpack.c.b16 %v1943, %v1943
  %v2008 = vpack.c.b16 %v1944, %v1944
  %v2009 = vpack.c.b16 %v1945, %v1945
  %v2010 = vpack.c.b16 %v1946, %v1946
  %v2011 = vpack.c.b16 %v1947, %v1947
  %v2012 = vpack.c.b16 %v1948, %v1948
  %v2013 = vpack.c.b16 %v1949, %v1949
  %v2014 = vpack.c.b16 %v1950, %v1950
  %v2015 = vpack.c.b16 %v1951, %v1951
  %v2016 = vpack.c.b16 %v1952, %v1952
  %v2017 = vpack.c.b16 %v1953, %v1953
  %v2018 = vpack.c.b16 %v1954, %v1954
  %v2019 = vpack.c.b16 %v1955, %v1955
  %v2020 = vpack.c.b16 %v1956, %v1956
  %v2021 = vpack.c.b16 %v1957, %v1957
  %v2022 = vpack.c.b16 %v1958, %v1958
  %v2023 = vpack.c.b16 %v1959, %v1959
  %v2024 = vpack.c.b16 %v1960, %v1960
  %v2025 = vpack.c.b16 %v1961, %v1961
  %v2026 = vpack.c.b16 %v1962, %v1962
  %v2027 = vpack.c.b16 %v1963, %v1963
  %v2028 = vpack.c.b16 %v1964, %v1964
  %v2029 = vpack.c.b16 %v1965, %v1965
  %v2030 = vpack.c.b16 %v1966, %v1966
  %v2031 = vpack.c.b16 %v1967, %v1967
  %v2032 = vpack.c.b16 %v1968, %v1968
  %v2033 = vpack.c.b16 %v1969, %v1969
  %v2034 = vpack.c.b16 %v1970, %v1970
  %v2035 = vpack.c.b16 %v1971, %v1971
  %v2036 = vpack.c.b16 %v1972, %v1972
  %v2037 = vpack.c.b16 %v1973, %v1973
  %v2038 = vpack.c.b16 %v1974, %v1974
  %v2039 = vpack.c.b16 %v1975, %v1975
  %v2040 = vpack.c.b16 %v1976, %v1976
  %v2041 = vpack.c.b16 %v1977, %v1977
  %v2042 = vpack.c.b16 %v1978, %v1978
  %v2043 = vpack.c.b16 %v1979, %v1979
  %v2044 = vpack.c.b16 %v1980, %v1980
  %v2045 = vpack.c.b16 %v1981, %v1981
  %v2046 = vpack.c.b16 %v1982, %v1982
  %v2047 = vpack.c.b16 %v1983, %v1983
  %v2048 = vpack.c.b16 %v1984, %v1984
  %v2049 = vpack.c.b16 %v1985, %v1985
  %v2050 = vpack.c.b16 %v1986, %v1986
  %v2051 = vpack.c.b16 %v1987, %v1987
  %v2052 = vpack.c.b16 %v1988, %v1988
  %v2053 = vpack.c.b16 %v1989, %v1989
  %v2054 = vpack.c.b16 %v1990, %v1990
  %v2055 = vpack.c.b16 %v1991, %v1991
  %v2056 = vpack.c.b16 %v1992, %v1992
  %v2057 = vpack.c.b16 %v1993, %v1993
  %v2058 = vpack.c.b16 %v1994, %v1994
  %v2059 = vpack.c.b16 %v1995, %v1995
  %v2060 = vpack.c.b16 %v1996, %v1996
  %v2061 = vpack.c.b16 %v1997, %v1997
  %v2062 = vpack.c.b16 %v1998, %v1998
  %2127 = vst [vmem:[%s6] sm:$0xf] %v1999
  %2128 = vst [vmem:[%s6 + $0x4] sm:$0xf] %v2000
  %2129 = vst [vmem:[%s6 + $0x8] sm:$0xf] %v2001
  %2130 = vst [vmem:[%s6 + $0xc] sm:$0xf] %v2002
  %2131 = vst [vmem:[%s6 + $0x10] sm:$0xf] %v2003
  %2132 = vst [vmem:[%s6 + $0x14] sm:$0xf] %v2004
  %2133 = vst [vmem:[%s6 + $0x18] sm:$0xf] %v2005
  %2134 = vst [vmem:[%s6 + $0x1c] sm:$0xf] %v2006
  %2135 = vst [vmem:[%s6 + $0x20] sm:$0xf] %v2007
  %2136 = vst [vmem:[%s6 + $0x24] sm:$0xf] %v2008
  %2137 = vst [vmem:[%s6 + $0x28] sm:$0xf] %v2009
  %2138 = vst [vmem:[%s6 + $0x2c] sm:$0xf] %v2010
  %2139 = vst [vmem:[%s6 + $0x30] sm:$0xf] %v2011
  %2140 = vst [vmem:[%s6 + $0x34] sm:$0xf] %v2012
  %2141 = vst [vmem:[%s6 + $0x38] sm:$0xf] %v2013
  %2142 = vst [vmem:[%s6 + $0x3c] sm:$0xf] %v2014
  %2143 = vst [vmem:[%s6 + $0x40] sm:$0xf] %v2015
  %2144 = vst [vmem:[%s6 + $0x44] sm:$0xf] %v2016
  %2145 = vst [vmem:[%s6 + $0x48] sm:$0xf] %v2017
  %2146 = vst [vmem:[%s6 + $0x4c] sm:$0xf] %v2018
  %2147 = vst [vmem:[%s6 + $0x50] sm:$0xf] %v2019
  %2148 = vst [vmem:[%s6 + $0x54] sm:$0xf] %v2020
  %2149 = vst [vmem:[%s6 + $0x58] sm:$0xf] %v2021
  %2150 = vst [vmem:[%s6 + $0x5c] sm:$0xf] %v2022
  %2151 = vst [vmem:[%s6 + $0x60] sm:$0xf] %v2023
  %2152 = vst [vmem:[%s6 + $0x64] sm:$0xf] %v2024
  %2153 = vst [vmem:[%s6 + $0x68] sm:$0xf] %v2025
  %2154 = vst [vmem:[%s6 + $0x6c] sm:$0xf] %v2026
  %2155 = vst [vmem:[%s6 + $0x70] sm:$0xf] %v2027
  %2156 = vst [vmem:[%s6 + $0x74] sm:$0xf] %v2028
  %2157 = vst [vmem:[%s6 + $0x78] sm:$0xf] %v2029
  %2158 = vst [vmem:[%s6 + $0x7c] sm:$0xf] %v2030
  %2159 = vst [vmem:[%s6 + $0x80] sm:$0xf] %v2031
  %2160 = vst [vmem:[%s6 + $0x84] sm:$0xf] %v2032
  %2161 = vst [vmem:[%s6 + $0x88] sm:$0xf] %v2033
  %2162 = vst [vmem:[%s6 + $0x8c] sm:$0xf] %v2034
  %2163 = vst [vmem:[%s6 + $0x90] sm:$0xf] %v2035
  %2164 = vst [vmem:[%s6 + $0x94] sm:$0xf] %v2036
  %2165 = vst [vmem:[%s6 + $0x98] sm:$0xf] %v2037
  %2166 = vst [vmem:[%s6 + $0x9c] sm:$0xf] %v2038
  %2167 = vst [vmem:[%s6 + $0xa0] sm:$0xf] %v2039
  %2168 = vst [vmem:[%s6 + $0xa4] sm:$0xf] %v2040
  %2169 = vst [vmem:[%s6 + $0xa8] sm:$0xf] %v2041
  %2170 = vst [vmem:[%s6 + $0xac] sm:$0xf] %v2042
  %2171 = vst [vmem:[%s6 + $0xb0] sm:$0xf] %v2043
  %2172 = vst [vmem:[%s6 + $0xb4] sm:$0xf] %v2044
  %2173 = vst [vmem:[%s6 + $0xb8] sm:$0xf] %v2045
  %2174 = vst [vmem:[%s6 + $0xbc] sm:$0xf] %v2046
  %2175 = vst [vmem:[%s6 + $0xc0] sm:$0xf] %v2047
  %2176 = vst [vmem:[%s6 + $0xc4] sm:$0xf] %v2048
  %2177 = vst [vmem:[%s6 + $0xc8] sm:$0xf] %v2049
  %2178 = vst [vmem:[%s6 + $0xcc] sm:$0xf] %v2050
  %2179 = vst [vmem:[%s6 + $0xd0] sm:$0xf] %v2051
  %2180 = vst [vmem:[%s6 + $0xd4] sm:$0xf] %v2052
  %2181 = vst [vmem:[%s6 + $0xd8] sm:$0xf] %v2053
  %2182 = vst [vmem:[%s6 + $0xdc] sm:$0xf] %v2054
  %2183 = vst [vmem:[%s6 + $0xe0] sm:$0xf] %v2055
  %2184 = vst [vmem:[%s6 + $0xe4] sm:$0xf] %v2056
  %2185 = vst [vmem:[%s6 + $0xe8] sm:$0xf] %v2057
  %2186 = vst [vmem:[%s6 + $0xec] sm:$0xf] %v2058
  %2187 = vst [vmem:[%s6 + $0xf0] sm:$0xf] %v2059
  %2188 = vst [vmem:[%s6 + $0xf4] sm:$0xf] %v2060
  %2189 = vst [vmem:[%s6 + $0xf8] sm:$0xf] %v2061
  %2190 = vst [vmem:[%s6 + $0xfc] sm:$0xf] %v2062
  // Predicated region
  $region26: #{multilabel_net_forward.1} parent=0 // pred_check
    _
  $region27: #{multilabel_net_forward.1} parent=0 // pred_check_branch
    %2192 = sbr.rel (0) target = $region29
  $region28: #{multilabel_net_forward.1} parent=0 // pred_region
    _
  $region29: #{multilabel_net_forward.1} parent=0 // pred_fallthru
    _
  // Predicated region
  $region30: #{multilabel_net_forward.1} parent=0 // pred_check
    _
  $region31: #{multilabel_net_forward.1} parent=0 // pred_check_branch
    %2194 = sbr.rel (0) target = $region33
  $region32: #{multilabel_net_forward.1} parent=0 // pred_region
    _
  $region33: #{multilabel_net_forward.1} parent=0 // pred_fallthru
    _

</llo_original>
